<compile_context>
chip_gen: v5e
topology: v5e:2x2
jax: 0.10.0
libtpu: 0.0.40
codegen_flags: <defaults>
</compile_context>

<pallas_src>
import functools

import jax
import jax.numpy as jnp
from jax.experimental import pallas as pl
from jax.experimental.pallas import tpu as pltpu


def _round_up(x, m):
    return (x + m - 1) // m * m


# ----------------------------------------------------------------------------
# Fused tower kernel.  Grid = (batch, layer); the output block (index (b, 0),
# constant over the layer axis) carries the activation across layer steps.
# ----------------------------------------------------------------------------
def _tower_kernel(x_ref, emb_ref, patch_w_ref, pre_ref,
                  pvec_ref, wqkv_ref, wo_ref, w1_ref, b1_ref, w2_ref,
                  o_ref, *, run_layers, num_heads, seq_real):
    S, D = o_ref.shape                       # S = padded sequence (mult. of 8)
    H = num_heads
    Dh = D // H
    scale = 1.0 / float(Dh) ** 0.5

    def ln(v, g, b):
        # one-pass LayerNorm: var = E[x^2] - E[x]^2, gamma/beta folded into a
        # single scale + shift (halves lane-axis reductions per LN).
        mu = jnp.mean(v, axis=-1, keepdims=True)
        m2 = jnp.mean(v * v, axis=-1, keepdims=True)
        inv = jax.lax.rsqrt(jnp.maximum(m2 - mu * mu, 0.0) + 1e-5)
        sc = inv * g
        return v * sc + (b - mu * sc)

    def mm(a, w):                            # bf16 MXU operands, f32 accum
        return jnp.dot(a.astype(jnp.bfloat16), w.astype(jnp.bfloat16),
                       preferred_element_type=jnp.float32)

    l = pl.program_id(1)

    # ---- layer 0 prologue: patch embed + cls/pos + pre-LN ------------------
    @pl.when(l == 0)
    def _():
        x0 = mm(x_ref[...], patch_w_ref[...]) + emb_ref[...]
        pre = pre_ref[...]
        o_ref[...] = ln(x0, pre[0:1, :], pre[1:2, :])

    if run_layers > 0:                       # static skip when 0 layers needed
        x = o_ref[...]                       # resident activation carry
        pv = pvec_ref[0]                     # [16, D] packed per-layer vectors
        # tiny additive mask suppressing padded key positions (built in-kernel)
        key_pos = jax.lax.broadcasted_iota(jnp.int32, (1, S), 1)
        kmask = jnp.where(key_pos < seq_real, 0.0, -1e9).astype(jnp.float32)

        # ---- multi-head self attention (per-head static lane slices) -------
        h = ln(x, pv[0:1, :], pv[1:2, :])
        qkv = mm(h, wqkv_ref[0])                             # [S, 3D]
        q = qkv[:, 0 * D:1 * D] + pv[2:3, :]
        k = qkv[:, 1 * D:2 * D] + pv[3:4, :]
        v = qkv[:, 2 * D:3 * D] + pv[4:5, :]

        ctx_parts = []
        for hh in range(H):
            sl = slice(hh * Dh, (hh + 1) * Dh)
            s = jax.lax.dot_general(
                q[:, sl].astype(jnp.bfloat16), k[:, sl].astype(jnp.bfloat16),
                (((1,), (1,)), ((), ())),
                preferred_element_type=jnp.float32) * scale + kmask   # [S, S]
            smax = jnp.max(s, axis=-1, keepdims=True)
            p = jnp.exp(s - smax)
            p = p * pl.reciprocal(jnp.sum(p, axis=-1, keepdims=True),
                                  approx=True)
            ctx_parts.append(
                jnp.dot(p.astype(jnp.bfloat16), v[:, sl].astype(jnp.bfloat16),
                        preferred_element_type=jnp.float32))          # [S, Dh]
        ctx = jnp.concatenate(ctx_parts, axis=-1)                     # [S, D]

        x = x + mm(ctx, wo_ref[0]) + pv[5:6, :]

        # ---- MLP with quick_gelu (CLIP) -------------------------------------
        h = ln(x, pv[6:7, :], pv[7:8, :])
        m1 = mm(h, w1_ref[0]) + b1_ref[0][0:1, :]
        m1 = m1 * jax.nn.sigmoid(1.702 * m1)
        x = x + mm(m1, w2_ref[0]) + pv[8:9, :]

        o_ref[...] = x


# ----------------------------------------------------------------------------
# Wrapper
# ----------------------------------------------------------------------------
class LanguageBindAudioTowerPallas:
    """JAX/Pallas re-implementation of LanguageBindAudioTower.forward."""

    # packed per-layer vector rows (in pvec[L, 16, D]):
    #   0 ln1_g, 1 ln1_b, 2 bq, 3 bk, 4 bv, 5 bo, 6 ln2_g, 7 ln2_b, 8 b2

    def __init__(self, audio_tower_name='LanguageBind/LanguageBind_Audio_FT',
                 select_layer=-2, select_feature='patch',
                 hidden=128, heads=4, num_layers=3, mlp_ratio=4,
                 channels=3, image_size=16, patch=8, seed=0):
        self.audio_tower_name = audio_tower_name
        self.select_layer = select_layer
        self.select_feature = select_feature
        self.hidden, self.heads = hidden, heads
        self.num_layers = num_layers
        self.channels, self.image_size, self.patch = channels, image_size, patch
        self.mlp = mlp_ratio * hidden

        D, M = hidden, self.mlp
        n_patches = (image_size // patch) ** 2
        self.seq = n_patches + 1                              # CLS + patches
        self.seq_pad = _round_up(self.seq, 8)                 # sublane rows
        self.kp = _round_up(channels * patch * patch, 128)    # lane-aligned K

        # hidden_states[select_layer] -> number of encoder layers to execute
        idx = select_layer if select_layer >= 0 else num_layers + 1 + select_layer
        assert 0 <= idx <= num_layers
        self.run_layers = idx

        root = jax.random.PRNGKey(seed)

        def normal(key, shape, scl=0.02):
            return scl * jax.random.normal(key, shape, dtype=jnp.float32)

        ks = jax.random.split(root, 3)
        # Conv2d(stride=patch, bias=False) weight flattened to a matmul;
        # contraction dim zero-padded to a multiple of 128, stored bf16.
        ckk = channels * patch * patch
        pw = normal(ks[0], (ckk, D))
        self.patch_w = (jnp.zeros((self.kp, D), jnp.float32)
                        .at[:ckk].set(pw).astype(jnp.bfloat16))

        cls = normal(ks[1], (D,))
        pos = normal(ks[2], (self.seq, D))
        emb = jnp.zeros((self.seq_pad, D), jnp.float32)
        emb = emb.at[:self.seq].set(pos)
        emb = emb.at[0].add(cls)                              # row 0 = CLS slot
        self.emb_add = emb

        pre = jnp.zeros((8, D), jnp.float32).at[0].set(1.0)   # row0 g, row1 b
        self.pre_ln = pre

        # Only the layers actually executed are materialized / shipped.
        Lk = max(self.run_layers, 1)
        wqkv_l, wo_l, w1_l, w2_l, b1_l, pv_l = [], [], [], [], [], []
        for li in range(Lk):
            k = jax.random.split(jax.random.fold_in(root, 100 + li), 6)
            wq, wk, wv = (normal(k[0], (D, D)), normal(k[1], (D, D)),
                          normal(k[2], (D, D)))
            wqkv_l.append(jnp.concatenate([wq, wk, wv], axis=1))   # [D, 3D]
            wo_l.append(normal(k[3], (D, D)))
            w1_l.append(normal(k[4], (D, M)))
            w2_l.append(normal(k[5], (M, D)))
            b1_l.append(jnp.zeros((8, M), jnp.float32))            # row 0 used
            pv = jnp.zeros((16, D), jnp.float32)
            pv = pv.at[0].set(1.0).at[6].set(1.0)                  # LN gains
            pv_l.append(pv)

        self.wqkv = jnp.stack(wqkv_l).astype(jnp.bfloat16)    # [L, D, 3D]
        self.wo = jnp.stack(wo_l).astype(jnp.bfloat16)        # [L, D, D]
        self.w1 = jnp.stack(w1_l).astype(jnp.bfloat16)        # [L, D, M]
        self.w2 = jnp.stack(w2_l).astype(jnp.bfloat16)        # [L, M, D]
        self.b1 = jnp.stack(b1_l)                              # [L, 8, M] f32
        self.pvec = jnp.stack(pv_l)                            # [L, 16, D] f32

        # VMEM budget: 2x streamed layer weights + constants + io blocks + work
        per_layer_w = sum(int(a.nbytes) // int(a.shape[0]) for a in
                          (self.pvec, self.wqkv, self.wo, self.w1, self.b1,
                           self.w2))
        const_b = int(self.emb_add.nbytes + self.patch_w.nbytes
                      + self.pre_ln.nbytes)
        Sp, KP = self.seq_pad, self.kp
        io_b = 2 * (Sp * KP * 2) + 2 * (Sp * D * 4)
        work_b = Sp * (5 * D + M) * 4 + 2 * Sp * Sp * 4
        est = 2 * per_layer_w + const_b + io_b + work_b + (4 << 20)
        self._vmem_limit = int(min(max(est, 32 << 20), 56 << 20))

    # ---------------- properties mirroring the PyTorch module ----------------
    @property
    def hidden_size(self):
        return self.hidden

    @property
    def num_patches(self):
        return (self.image_size // self.patch) ** 2

    @property
    def dummy_feature(self):
        return jnp.zeros((1, self.hidden), jnp.float32)

    def feature_select(self, audio_forward_outs):
        # select_layer is applied inside _tower (only the needed layers run);
        # select_feature='patch' keeps all tokens (no slicing in the reference).
        return audio_forward_outs

    # ---------------- fused tower ----------------
    def _tower(self, audios):
        audios = jnp.asarray(audios)
        B, C, Hh, Ww = audios.shape
        P, D, M = self.patch, self.hidden, self.mlp
        Hn, Wn = Hh // P, Ww // P
        S, Sp, KP = self.seq, self.seq_pad, self.kp
        Lr = self.run_layers
        Lg = max(Lr, 1)                       # grid extent along the layer axis

        # NCHW -> patch-major rows [B*Sp, KP] (bf16); row 0 of each element is
        # the (zero) CLS slot, trailing rows/lanes are zero padding.
        x = audios.astype(jnp.float32)
        patches = x.reshape(B, C, Hn, P, Wn, P)
        patches = jnp.transpose(patches, (0, 2, 4, 1, 3, 5)).reshape(
            B, Hn * Wn, C * P * P)
        rows = jnp.zeros((B, Sp, KP), jnp.float32)
        rows = rows.at[:, 1:1 + Hn * Wn, :C * P * P].set(patches)
        rows = rows.reshape(B * Sp, KP).astype(jnp.bfloat16)

        in_specs = [
            pl.BlockSpec((Sp, KP), lambda b, l: (b, 0)),          # patch rows
            pl.BlockSpec((Sp, D), lambda b, l: (0, 0)),           # cls+pos
            pl.BlockSpec((KP, D), lambda b, l: (0, 0)),           # patch proj
            pl.BlockSpec((8, D), lambda b, l: (0, 0)),            # pre-LN g/b
            pl.BlockSpec((1, 16, D), lambda b, l: (l, 0, 0)),     # packed vecs
            pl.BlockSpec((1, D, 3 * D), lambda b, l: (l, 0, 0)),  # Wqkv
            pl.BlockSpec((1, D, D), lambda b, l: (l, 0, 0)),      # Wo
            pl.BlockSpec((1, D, M), lambda b, l: (l, 0, 0)),      # W1
            pl.BlockSpec((1, 8, M), lambda b, l: (l, 0, 0)),      # b1
            pl.BlockSpec((1, M, D), lambda b, l: (l, 0, 0)),      # W2
        ]
        out_spec = pl.BlockSpec((Sp, D), lambda b, l: (b, 0))

        per_layer_flops = (2 * Sp * D * 3 * D + 4 * Sp * Sp * D
                           + 2 * Sp * D * D + 4 * Sp * D * M)
        flops = B * (2 * Sp * KP * D + Lr * per_layer_flops)
        trans = B * Lr * (self.heads * Sp * Sp + Sp * M + 3 * Sp)
        bytes_acc = (int(rows.nbytes) + B * Sp * D * 4
                     + B * int(self.wqkv.nbytes + self.wo.nbytes
                               + self.w1.nbytes + self.w2.nbytes
                               + self.pvec.nbytes + self.b1.nbytes)
                     + int(self.emb_add.nbytes + self.patch_w.nbytes
                           + self.pre_ln.nbytes))

        out = pl.pallas_call(
            functools.partial(_tower_kernel, run_layers=Lr,
                              num_heads=self.heads, seq_real=S),
            out_shape=jax.ShapeDtypeStruct((B * Sp, D), jnp.float32),
            grid=(B, Lg),
            in_specs=in_specs,
            out_specs=out_spec,
            compiler_params=pltpu.CompilerParams(
                dimension_semantics=("parallel", "arbitrary"),
                vmem_limit_bytes=self._vmem_limit),
            cost_estimate=pl.CostEstimate(flops=int(flops),
                                          transcendentals=int(trans),
                                          bytes_accessed=int(bytes_acc)),
        )(rows, self.emb_add, self.patch_w, self.pre_ln,
          self.pvec, self.wqkv, self.wo, self.w1, self.b1, self.w2)

        # drop sequence padding -> [B, seq, D] = hidden_states[select_layer]
        return out.reshape(B, Sp, D)[:, :S, :]

    # ---------------- forward ----------------
    def forward(self, audios, text_querys=None):
        if isinstance(audios, (list, tuple)):
            # PyTorch path runs each element with batch=1; stacking and running
            # one fused kernel gives identical values with a single launch.
            batch = jnp.stack([jnp.asarray(a) for a in audios], axis=0)
            feats = self._tower(batch)
            audio_features = [feats[i:i + 1] for i in range(feats.shape[0])]
        else:
            audio_features = self._tower(audios)
        return audio_features, None

    __call__ = forward


# ----------------------------------------------------------------------------
if __name__ == "__main__":
    key = jax.random.PRNGKey(0)
    tower = LanguageBindAudioTowerPallas(
        select_layer=-2, select_feature='patch',
        hidden=128, heads=4, num_layers=3,
        channels=3, image_size=16, patch=8, seed=0)

    # audio spectrograms treated as 3-channel images: [B, C, H, W]
    audios = jax.random.normal(key, (2, 3, 16, 16), dtype=jnp.float32)

    features, _ = tower.forward(audios)
    jax.block_until_ready(features)

    assert features.shape == (2, tower.num_patches + 1, tower.hidden_size), \
        features.shape
    assert bool(jnp.all(jnp.isfinite(features)))
    print("KERNEL_OK")
</pallas_src>

<mosaic_0001>
module attributes {stable_mosaic.version = 11 : i64} {
  func.func @_tower_kernel(%arg0: i32, %arg1: i32, %arg2: memref<8x256xbf16, #tpu.memory_space<vmem>>, %arg3: memref<8x128xf32, #tpu.memory_space<vmem>>, %arg4: memref<256x128xbf16, #tpu.memory_space<vmem>>, %arg5: memref<8x128xf32, #tpu.memory_space<vmem>>, %arg6: memref<1x16x128xf32, #tpu.memory_space<vmem>>, %arg7: memref<1x128x384xbf16, #tpu.memory_space<vmem>>, %arg8: memref<1x128x128xbf16, #tpu.memory_space<vmem>>, %arg9: memref<1x128x512xbf16, #tpu.memory_space<vmem>>, %arg10: memref<1x8x512xf32, #tpu.memory_space<vmem>>, %arg11: memref<1x512x128xbf16, #tpu.memory_space<vmem>>, %arg12: memref<8x128xf32, #tpu.memory_space<vmem>>) attributes {dimension_semantics = [#tpu.dimension_semantics<parallel>, #tpu.dimension_semantics<arbitrary>], iteration_bounds = array<i64: 2, 2>, scalar_prefetch = 0 : i64, scratch_operands = 0 : i64, tpu.core_type = #tpu.core_type<tc>, window_params = [{transform_indices = @transform_0, window_bounds = array<i64: 8, 256>}, {pipeline_mode = #tpu.pipeline_mode<synchronous>, transform_indices = @transform_1, window_bounds = array<i64: 8, 128>}, {pipeline_mode = #tpu.pipeline_mode<synchronous>, transform_indices = @transform_2, window_bounds = array<i64: 256, 128>}, {pipeline_mode = #tpu.pipeline_mode<synchronous>, transform_indices = @transform_3, window_bounds = array<i64: 8, 128>}, {transform_indices = @transform_4, window_bounds = array<i64: 1, 16, 128>}, {transform_indices = @transform_5, window_bounds = array<i64: 1, 128, 384>}, {transform_indices = @transform_6, window_bounds = array<i64: 1, 128, 128>}, {transform_indices = @transform_7, window_bounds = array<i64: 1, 128, 512>}, {transform_indices = @transform_8, window_bounds = array<i64: 1, 8, 512>}, {transform_indices = @transform_9, window_bounds = array<i64: 1, 512, 128>}, {transform_indices = @transform_10, window_bounds = array<i64: 8, 128>}]} {
    %c0_i32 = arith.constant 0 : i32
    %0 = arith.cmpi eq, %arg1, %c0_i32 : i32
    %1 = arith.extui %0 : i1 to i32
    %c0_i32_0 = arith.constant 0 : i32
    %2 = arith.cmpi ne, %1, %c0_i32_0 : i32
    scf.if %2 {
      %c0_61 = arith.constant 0 : index
      %c0_62 = arith.constant 0 : index
      %209 = vector.load %arg2[%c0_61, %c0_62] : memref<8x256xbf16, #tpu.memory_space<vmem>>, vector<8x256xbf16>
      %c0_63 = arith.constant 0 : index
      %c0_64 = arith.constant 0 : index
      %210 = vector.load %arg4[%c0_63, %c0_64] : memref<256x128xbf16, #tpu.memory_space<vmem>>, vector<256x128xbf16>
      %cst_65 = arith.constant dense<0.000000e+00> : vector<8x128xf32>
      %211 = tpu.matmul %209, %210, %cst_65 {dimension_numbers = #tpu.dot_dimension_numbers<[1], [0], [0], [1], [0, 0, 1, 1], [], []>} : vector<8x256xbf16>, vector<256x128xbf16>, vector<8x128xf32> -> vector<8x128xf32>
      %c0_66 = arith.constant 0 : index
      %c0_67 = arith.constant 0 : index
      %212 = vector.load %arg3[%c0_66, %c0_67] : memref<8x128xf32, #tpu.memory_space<vmem>>, vector<8x128xf32>
      %213 = arith.addf %211, %212 : vector<8x128xf32>
      %c0_68 = arith.constant 0 : index
      %c0_69 = arith.constant 0 : index
      %214 = vector.load %arg5[%c0_68, %c0_69] : memref<8x128xf32, #tpu.memory_space<vmem>>, vector<8x128xf32>
      %215 = vector.extract_strided_slice %214 {offsets = [0, 0], sizes = [1, 128], strides = [1, 1]} : vector<8x128xf32> to vector<1x128xf32>
      %216 = vector.extract_strided_slice %214 {offsets = [1, 0], sizes = [1, 128], strides = [1, 1]} : vector<8x128xf32> to vector<1x128xf32>
      %cst_70 = arith.constant dense<0.000000e+00> : vector<8xf32>
      %217 = vector.multi_reduction <add>, %213, %cst_70 [1] : vector<8x128xf32> to vector<8xf32>
      %218 = vector.shape_cast %217 : vector<8xf32> to vector<8x1xf32>
      %cst_71 = arith.constant 1.280000e+02 : f32
      %219 = vector.broadcast %cst_71 : f32 to vector<8x1xf32>
      %220 = arith.divf %218, %219 : vector<8x1xf32>
      %221 = arith.mulf %213, %213 : vector<8x128xf32>
      %cst_72 = arith.constant dense<0.000000e+00> : vector<8xf32>
      %222 = vector.multi_reduction <add>, %221, %cst_72 [1] : vector<8x128xf32> to vector<8xf32>
      %223 = vector.shape_cast %222 : vector<8xf32> to vector<8x1xf32>
      %cst_73 = arith.constant 1.280000e+02 : f32
      %224 = vector.broadcast %cst_73 : f32 to vector<8x1xf32>
      %225 = arith.divf %223, %224 : vector<8x1xf32>
      %226 = arith.mulf %220, %220 : vector<8x1xf32>
      %227 = arith.subf %225, %226 : vector<8x1xf32>
      %cst_74 = arith.constant 0.000000e+00 : f32
      %228 = vector.broadcast %cst_74 : f32 to vector<8x1xf32>
      %229 = arith.maximumf %227, %228 : vector<8x1xf32>
      %cst_75 = arith.constant 9.99999974E-6 : f32
      %230 = vector.broadcast %cst_75 : f32 to vector<8x1xf32>
      %231 = arith.addf %229, %230 : vector<8x1xf32>
      %232 = math.rsqrt %231 : vector<8x1xf32>
      %233 = vector.broadcast %232 : vector<8x1xf32> to vector<8x128xf32>
      %234 = vector.broadcast %215 : vector<1x128xf32> to vector<8x128xf32>
      %235 = arith.mulf %233, %234 : vector<8x128xf32>
      %236 = arith.mulf %213, %235 : vector<8x128xf32>
      %237 = vector.broadcast %220 : vector<8x1xf32> to vector<8x128xf32>
      %238 = arith.mulf %237, %235 : vector<8x128xf32>
      %239 = vector.broadcast %216 : vector<1x128xf32> to vector<8x128xf32>
      %240 = arith.subf %239, %238 : vector<8x128xf32>
      %241 = arith.addf %236, %240 : vector<8x128xf32>
      %c0_76 = arith.constant 0 : index
      %c0_77 = arith.constant 0 : index
      %242 = vector.load %arg12[%c0_76, %c0_77] : memref<8x128xf32, #tpu.memory_space<vmem>>, vector<8x128xf32>
      tpu.vector_store %arg12[%c0_76, %c0_77], %241 {strides = array<i32>} : memref<8x128xf32, #tpu.memory_space<vmem>>, vector<8x128xf32>,
    } else {
    }
    %c0 = arith.constant 0 : index
    %c0_1 = arith.constant 0 : index
    %3 = vector.load %arg12[%c0, %c0_1] : memref<8x128xf32, #tpu.memory_space<vmem>>, vector<8x128xf32>
    %c0_2 = arith.constant 0 : index
    %c0_3 = arith.constant 0 : index
    %c0_4 = arith.constant 0 : index
    %4 = vector.load %arg6[%c0_2, %c0_3, %c0_4] : memref<1x16x128xf32, #tpu.memory_space<vmem>>, vector<1x16x128xf32>
    %5 = vector.shape_cast %4 : vector<1x16x128xf32> to vector<16x128xf32>
    %6 = tpu.iota {dimensions = array<i32: 1>} : vector<1x8xi32>
    %c5_i32 = arith.constant 5 : i32
    %7 = vector.broadcast %c5_i32 : i32 to vector<1x8xi32>
    %8 = arith.cmpi slt, %6, %7 : vector<1x8xi32>
    %cst = arith.constant 0.000000e+00 : f32
    %cst_5 = arith.constant -1.000000e+09 : f32
    %9 = vector.broadcast %cst : f32 to vector<1x8xf32>
    %10 = vector.broadcast %cst_5 : f32 to vector<1x8xf32>
    %11 = arith.select %8, %9, %10 : vector<1x8xi1>, vector<1x8xf32>
    %12 = vector.extract_strided_slice %5 {offsets = [0, 0], sizes = [1, 128], strides = [1, 1]} : vector<16x128xf32> to vector<1x128xf32>
    %13 = vector.extract_strided_slice %5 {offsets = [1, 0], sizes = [1, 128], strides = [1, 1]} : vector<16x128xf32> to vector<1x128xf32>
    %cst_6 = arith.constant dense<0.000000e+00> : vector<8xf32>
    %14 = vector.multi_reduction <add>, %3, %cst_6 [1] : vector<8x128xf32> to vector<8xf32>
    %15 = vector.shape_cast %14 : vector<8xf32> to vector<8x1xf32>
    %cst_7 = arith.constant 1.280000e+02 : f32
    %16 = vector.broadcast %cst_7 : f32 to vector<8x1xf32>
    %17 = arith.divf %15, %16 : vector<8x1xf32>
    %18 = arith.mulf %3, %3 : vector<8x128xf32>
    %cst_8 = arith.constant dense<0.000000e+00> : vector<8xf32>
    %19 = vector.multi_reduction <add>, %18, %cst_8 [1] : vector<8x128xf32> to vector<8xf32>
    %20 = vector.shape_cast %19 : vector<8xf32> to vector<8x1xf32>
    %cst_9 = arith.constant 1.280000e+02 : f32
    %21 = vector.broadcast %cst_9 : f32 to vector<8x1xf32>
    %22 = arith.divf %20, %21 : vector<8x1xf32>
    %23 = arith.mulf %17, %17 : vector<8x1xf32>
    %24 = arith.subf %22, %23 : vector<8x1xf32>
    %cst_10 = arith.constant 0.000000e+00 : f32
    %25 = vector.broadcast %cst_10 : f32 to vector<8x1xf32>
    %26 = arith.maximumf %24, %25 : vector<8x1xf32>
    %cst_11 = arith.constant 9.99999974E-6 : f32
    %27 = vector.broadcast %cst_11 : f32 to vector<8x1xf32>
    %28 = arith.addf %26, %27 : vector<8x1xf32>
    %29 = math.rsqrt %28 : vector<8x1xf32>
    %30 = vector.broadcast %29 : vector<8x1xf32> to vector<8x128xf32>
    %31 = vector.broadcast %12 : vector<1x128xf32> to vector<8x128xf32>
    %32 = arith.mulf %30, %31 : vector<8x128xf32>
    %33 = arith.mulf %3, %32 : vector<8x128xf32>
    %34 = vector.broadcast %17 : vector<8x1xf32> to vector<8x128xf32>
    %35 = arith.mulf %34, %32 : vector<8x128xf32>
    %36 = vector.broadcast %13 : vector<1x128xf32> to vector<8x128xf32>
    %37 = arith.subf %36, %35 : vector<8x128xf32>
    %38 = arith.addf %33, %37 : vector<8x128xf32>
    %c0_12 = arith.constant 0 : index
    %c0_13 = arith.constant 0 : index
    %c0_14 = arith.constant 0 : index
    %39 = vector.load %arg7[%c0_12, %c0_13, %c0_14] : memref<1x128x384xbf16, #tpu.memory_space<vmem>>, vector<1x128x384xbf16>
    %40 = vector.shape_cast %39 : vector<1x128x384xbf16> to vector<128x384xbf16>
    %41 = arith.truncf %38 : vector<8x128xf32> to vector<8x128xbf16>
    %cst_15 = arith.constant dense<0.000000e+00> : vector<8x384xf32>
    %42 = tpu.matmul %41, %40, %cst_15 {dimension_numbers = #tpu.dot_dimension_numbers<[1], [0], [0], [1], [0, 0, 1, 1], [], []>} : vector<8x128xbf16>, vector<128x384xbf16>, vector<8x384xf32> -> vector<8x384xf32>
    %43 = vector.extract_strided_slice %42 {offsets = [0, 0], sizes = [8, 128], strides = [1, 1]} : vector<8x384xf32> to vector<8x128xf32>
    %44 = vector.extract_strided_slice %5 {offsets = [2, 0], sizes = [1, 128], strides = [1, 1]} : vector<16x128xf32> to vector<1x128xf32>
    %45 = vector.broadcast %44 : vector<1x128xf32> to vector<8x128xf32>
    %46 = arith.addf %43, %45 : vector<8x128xf32>
    %47 = vector.extract_strided_slice %42 {offsets = [0, 128], sizes = [8, 128], strides = [1, 1]} : vector<8x384xf32> to vector<8x128xf32>
    %48 = vector.extract_strided_slice %5 {offsets = [3, 0], sizes = [1, 128], strides = [1, 1]} : vector<16x128xf32> to vector<1x128xf32>
    %49 = vector.broadcast %48 : vector<1x128xf32> to vector<8x128xf32>
    %50 = arith.addf %47, %49 : vector<8x128xf32>
    %51 = vector.extract_strided_slice %42 {offsets = [0, 256], sizes = [8, 128], strides = [1, 1]} : vector<8x384xf32> to vector<8x128xf32>
    %52 = vector.extract_strided_slice %5 {offsets = [4, 0], sizes = [1, 128], strides = [1, 1]} : vector<16x128xf32> to vector<1x128xf32>
    %53 = vector.broadcast %52 : vector<1x128xf32> to vector<8x128xf32>
    %54 = arith.addf %51, %53 : vector<8x128xf32>
    %55 = vector.extract_strided_slice %46 {offsets = [0, 0], sizes = [8, 32], strides = [1, 1]} : vector<8x128xf32> to vector<8x32xf32>
    %56 = arith.truncf %55 : vector<8x32xf32> to vector<8x32xbf16>
    %57 = vector.extract_strided_slice %50 {offsets = [0, 0], sizes = [8, 32], strides = [1, 1]} : vector<8x128xf32> to vector<8x32xf32>
    %58 = arith.truncf %57 : vector<8x32xf32> to vector<8x32xbf16>
    %cst_16 = arith.constant dense<0.000000e+00> : vector<8x8xf32>
    %59 = tpu.matmul %56, %58, %cst_16 {dimension_numbers = #tpu.dot_dimension_numbers<[1], [1], [0], [0], [0, 0, 1, 0], [], []>} : vector<8x32xbf16>, vector<8x32xbf16>, vector<8x8xf32> -> vector<8x8xf32>
    %cst_17 = arith.constant 0.176776692 : f32
    %60 = vector.broadcast %cst_17 : f32 to vector<8x8xf32>
    %61 = arith.mulf %59, %60 : vector<8x8xf32>
    %62 = vector.broadcast %11 : vector<1x8xf32> to vector<8x8xf32>
    %63 = arith.addf %61, %62 : vector<8x8xf32>
    %cst_18 = arith.constant dense<0xFF800000> : vector<8xf32>
    %64 = vector.multi_reduction <maximumf>, %63, %cst_18 [1] : vector<8x8xf32> to vector<8xf32>
    %65 = vector.shape_cast %64 : vector<8xf32> to vector<8x1xf32>
    %66 = vector.broadcast %65 : vector<8x1xf32> to vector<8x8xf32>
    %67 = arith.subf %63, %66 : vector<8x8xf32>
    %68 = math.exp %67 : vector<8x8xf32>
    %cst_19 = arith.constant dense<0.000000e+00> : vector<8xf32>
    %69 = vector.multi_reduction <add>, %68, %cst_19 [1] : vector<8x8xf32> to vector<8xf32>
    %70 = vector.shape_cast %69 : vector<8xf32> to vector<8x1xf32>
    %71 = tpu.reciprocal %70 {approx = true} : vector<8x1xf32> -> vector<8x1xf32>
    %72 = vector.broadcast %71 : vector<8x1xf32> to vector<8x8xf32>
    %73 = arith.mulf %68, %72 : vector<8x8xf32>
    %74 = arith.truncf %73 : vector<8x8xf32> to vector<8x8xbf16>
    %75 = vector.extract_strided_slice %54 {offsets = [0, 0], sizes = [8, 32], strides = [1, 1]} : vector<8x128xf32> to vector<8x32xf32>
    %76 = arith.truncf %75 : vector<8x32xf32> to vector<8x32xbf16>
    %cst_20 = arith.constant dense<0.000000e+00> : vector<8x32xf32>
    %77 = tpu.matmul %74, %76, %cst_20 {dimension_numbers = #tpu.dot_dimension_numbers<[1], [0], [0], [1], [0, 0, 1, 1], [], []>} : vector<8x8xbf16>, vector<8x32xbf16>, vector<8x32xf32> -> vector<8x32xf32>
    %78 = vector.extract_strided_slice %46 {offsets = [0, 32], sizes = [8, 32], strides = [1, 1]} : vector<8x128xf32> to vector<8x32xf32>
    %79 = arith.truncf %78 : vector<8x32xf32> to vector<8x32xbf16>
    %80 = vector.extract_strided_slice %50 {offsets = [0, 32], sizes = [8, 32], strides = [1, 1]} : vector<8x128xf32> to vector<8x32xf32>
    %81 = arith.truncf %80 : vector<8x32xf32> to vector<8x32xbf16>
    %cst_21 = arith.constant dense<0.000000e+00> : vector<8x8xf32>
    %82 = tpu.matmul %79, %81, %cst_21 {dimension_numbers = #tpu.dot_dimension_numbers<[1], [1], [0], [0], [0, 0, 1, 0], [], []>} : vector<8x32xbf16>, vector<8x32xbf16>, vector<8x8xf32> -> vector<8x8xf32>
    %cst_22 = arith.constant 0.176776692 : f32
    %83 = vector.broadcast %cst_22 : f32 to vector<8x8xf32>
    %84 = arith.mulf %82, %83 : vector<8x8xf32>
    %85 = vector.broadcast %11 : vector<1x8xf32> to vector<8x8xf32>
    %86 = arith.addf %84, %85 : vector<8x8xf32>
    %cst_23 = arith.constant dense<0xFF800000> : vector<8xf32>
    %87 = vector.multi_reduction <maximumf>, %86, %cst_23 [1] : vector<8x8xf32> to vector<8xf32>
    %88 = vector.shape_cast %87 : vector<8xf32> to vector<8x1xf32>
    %89 = vector.broadcast %88 : vector<8x1xf32> to vector<8x8xf32>
    %90 = arith.subf %86, %89 : vector<8x8xf32>
    %91 = math.exp %90 : vector<8x8xf32>
    %cst_24 = arith.constant dense<0.000000e+00> : vector<8xf32>
    %92 = vector.multi_reduction <add>, %91, %cst_24 [1] : vector<8x8xf32> to vector<8xf32>
    %93 = vector.shape_cast %92 : vector<8xf32> to vector<8x1xf32>
    %94 = tpu.reciprocal %93 {approx = true} : vector<8x1xf32> -> vector<8x1xf32>
    %95 = vector.broadcast %94 : vector<8x1xf32> to vector<8x8xf32>
    %96 = arith.mulf %91, %95 : vector<8x8xf32>
    %97 = arith.truncf %96 : vector<8x8xf32> to vector<8x8xbf16>
    %98 = vector.extract_strided_slice %54 {offsets = [0, 32], sizes = [8, 32], strides = [1, 1]} : vector<8x128xf32> to vector<8x32xf32>
    %99 = arith.truncf %98 : vector<8x32xf32> to vector<8x32xbf16>
    %cst_25 = arith.constant dense<0.000000e+00> : vector<8x32xf32>
    %100 = tpu.matmul %97, %99, %cst_25 {dimension_numbers = #tpu.dot_dimension_numbers<[1], [0], [0], [1], [0, 0, 1, 1], [], []>} : vector<8x8xbf16>, vector<8x32xbf16>, vector<8x32xf32> -> vector<8x32xf32>
    %101 = vector.extract_strided_slice %46 {offsets = [0, 64], sizes = [8, 32], strides = [1, 1]} : vector<8x128xf32> to vector<8x32xf32>
    %102 = arith.truncf %101 : vector<8x32xf32> to vector<8x32xbf16>
    %103 = vector.extract_strided_slice %50 {offsets = [0, 64], sizes = [8, 32], strides = [1, 1]} : vector<8x128xf32> to vector<8x32xf32>
    %104 = arith.truncf %103 : vector<8x32xf32> to vector<8x32xbf16>
    %cst_26 = arith.constant dense<0.000000e+00> : vector<8x8xf32>
    %105 = tpu.matmul %102, %104, %cst_26 {dimension_numbers = #tpu.dot_dimension_numbers<[1], [1], [0], [0], [0, 0, 1, 0], [], []>} : vector<8x32xbf16>, vector<8x32xbf16>, vector<8x8xf32> -> vector<8x8xf32>
    %cst_27 = arith.constant 0.176776692 : f32
    %106 = vector.broadcast %cst_27 : f32 to vector<8x8xf32>
    %107 = arith.mulf %105, %106 : vector<8x8xf32>
    %108 = vector.broadcast %11 : vector<1x8xf32> to vector<8x8xf32>
    %109 = arith.addf %107, %108 : vector<8x8xf32>
    %cst_28 = arith.constant dense<0xFF800000> : vector<8xf32>
    %110 = vector.multi_reduction <maximumf>, %109, %cst_28 [1] : vector<8x8xf32> to vector<8xf32>
    %111 = vector.shape_cast %110 : vector<8xf32> to vector<8x1xf32>
    %112 = vector.broadcast %111 : vector<8x1xf32> to vector<8x8xf32>
    %113 = arith.subf %109, %112 : vector<8x8xf32>
    %114 = math.exp %113 : vector<8x8xf32>
    %cst_29 = arith.constant dense<0.000000e+00> : vector<8xf32>
    %115 = vector.multi_reduction <add>, %114, %cst_29 [1] : vector<8x8xf32> to vector<8xf32>
    %116 = vector.shape_cast %115 : vector<8xf32> to vector<8x1xf32>
    %117 = tpu.reciprocal %116 {approx = true} : vector<8x1xf32> -> vector<8x1xf32>
    %118 = vector.broadcast %117 : vector<8x1xf32> to vector<8x8xf32>
    %119 = arith.mulf %114, %118 : vector<8x8xf32>
    %120 = arith.truncf %119 : vector<8x8xf32> to vector<8x8xbf16>
    %121 = vector.extract_strided_slice %54 {offsets = [0, 64], sizes = [8, 32], strides = [1, 1]} : vector<8x128xf32> to vector<8x32xf32>
    %122 = arith.truncf %121 : vector<8x32xf32> to vector<8x32xbf16>
    %cst_30 = arith.constant dense<0.000000e+00> : vector<8x32xf32>
    %123 = tpu.matmul %120, %122, %cst_30 {dimension_numbers = #tpu.dot_dimension_numbers<[1], [0], [0], [1], [0, 0, 1, 1], [], []>} : vector<8x8xbf16>, vector<8x32xbf16>, vector<8x32xf32> -> vector<8x32xf32>
    %124 = vector.extract_strided_slice %46 {offsets = [0, 96], sizes = [8, 32], strides = [1, 1]} : vector<8x128xf32> to vector<8x32xf32>
    %125 = arith.truncf %124 : vector<8x32xf32> to vector<8x32xbf16>
    %126 = vector.extract_strided_slice %50 {offsets = [0, 96], sizes = [8, 32], strides = [1, 1]} : vector<8x128xf32> to vector<8x32xf32>
    %127 = arith.truncf %126 : vector<8x32xf32> to vector<8x32xbf16>
    %cst_31 = arith.constant dense<0.000000e+00> : vector<8x8xf32>
    %128 = tpu.matmul %125, %127, %cst_31 {dimension_numbers = #tpu.dot_dimension_numbers<[1], [1], [0], [0], [0, 0, 1, 0], [], []>} : vector<8x32xbf16>, vector<8x32xbf16>, vector<8x8xf32> -> vector<8x8xf32>
    %cst_32 = arith.constant 0.176776692 : f32
    %129 = vector.broadcast %cst_32 : f32 to vector<8x8xf32>
    %130 = arith.mulf %128, %129 : vector<8x8xf32>
    %131 = vector.broadcast %11 : vector<1x8xf32> to vector<8x8xf32>
    %132 = arith.addf %130, %131 : vector<8x8xf32>
    %cst_33 = arith.constant dense<0xFF800000> : vector<8xf32>
    %133 = vector.multi_reduction <maximumf>, %132, %cst_33 [1] : vector<8x8xf32> to vector<8xf32>
    %134 = vector.shape_cast %133 : vector<8xf32> to vector<8x1xf32>
    %135 = vector.broadcast %134 : vector<8x1xf32> to vector<8x8xf32>
    %136 = arith.subf %132, %135 : vector<8x8xf32>
    %137 = math.exp %136 : vector<8x8xf32>
    %cst_34 = arith.constant dense<0.000000e+00> : vector<8xf32>
    %138 = vector.multi_reduction <add>, %137, %cst_34 [1] : vector<8x8xf32> to vector<8xf32>
    %139 = vector.shape_cast %138 : vector<8xf32> to vector<8x1xf32>
    %140 = tpu.reciprocal %139 {approx = true} : vector<8x1xf32> -> vector<8x1xf32>
    %141 = vector.broadcast %140 : vector<8x1xf32> to vector<8x8xf32>
    %142 = arith.mulf %137, %141 : vector<8x8xf32>
    %143 = arith.truncf %142 : vector<8x8xf32> to vector<8x8xbf16>
    %144 = vector.extract_strided_slice %54 {offsets = [0, 96], sizes = [8, 32], strides = [1, 1]} : vector<8x128xf32> to vector<8x32xf32>
    %145 = arith.truncf %144 : vector<8x32xf32> to vector<8x32xbf16>
    %cst_35 = arith.constant dense<0.000000e+00> : vector<8x32xf32>
    %146 = tpu.matmul %143, %145, %cst_35 {dimension_numbers = #tpu.dot_dimension_numbers<[1], [0], [0], [1], [0, 0, 1, 1], [], []>} : vector<8x8xbf16>, vector<8x32xbf16>, vector<8x32xf32> -> vector<8x32xf32>
    %147 = tpu.concatenate %77, %100, %123, %146 in 1 : vector<8x32xf32>, vector<8x32xf32>, vector<8x32xf32>, vector<8x32xf32> -> vector<8x128xf32>
    %c0_36 = arith.constant 0 : index
    %c0_37 = arith.constant 0 : index
    %c0_38 = arith.constant 0 : index
    %148 = vector.load %arg8[%c0_36, %c0_37, %c0_38] : memref<1x128x128xbf16, #tpu.memory_space<vmem>>, vector<1x128x128xbf16>
    %149 = vector.shape_cast %148 : vector<1x128x128xbf16> to vector<128x128xbf16>
    %150 = arith.truncf %147 : vector<8x128xf32> to vector<8x128xbf16>
    %cst_39 = arith.constant dense<0.000000e+00> : vector<8x128xf32>
    %151 = tpu.matmul %150, %149, %cst_39 {dimension_numbers = #tpu.dot_dimension_numbers<[1], [0], [0], [1], [0, 0, 1, 1], [], []>} : vector<8x128xbf16>, vector<128x128xbf16>, vector<8x128xf32> -> vector<8x128xf32>
    %152 = arith.addf %3, %151 : vector<8x128xf32>
    %153 = vector.extract_strided_slice %5 {offsets = [5, 0], sizes = [1, 128], strides = [1, 1]} : vector<16x128xf32> to vector<1x128xf32>
    %154 = vector.broadcast %153 : vector<1x128xf32> to vector<8x128xf32>
    %155 = arith.addf %152, %154 : vector<8x128xf32>
    %156 = vector.extract_strided_slice %5 {offsets = [6, 0], sizes = [1, 128], strides = [1, 1]} : vector<16x128xf32> to vector<1x128xf32>
    %157 = vector.extract_strided_slice %5 {offsets = [7, 0], sizes = [1, 128], strides = [1, 1]} : vector<16x128xf32> to vector<1x128xf32>
    %cst_40 = arith.constant dense<0.000000e+00> : vector<8xf32>
    %158 = vector.multi_reduction <add>, %155, %cst_40 [1] : vector<8x128xf32> to vector<8xf32>
    %159 = vector.shape_cast %158 : vector<8xf32> to vector<8x1xf32>
    %cst_41 = arith.constant 1.280000e+02 : f32
    %160 = vector.broadcast %cst_41 : f32 to vector<8x1xf32>
    %161 = arith.divf %159, %160 : vector<8x1xf32>
    %162 = arith.mulf %155, %155 : vector<8x128xf32>
    %cst_42 = arith.constant dense<0.000000e+00> : vector<8xf32>
    %163 = vector.multi_reduction <add>, %162, %cst_42 [1] : vector<8x128xf32> to vector<8xf32>
    %164 = vector.shape_cast %163 : vector<8xf32> to vector<8x1xf32>
    %cst_43 = arith.constant 1.280000e+02 : f32
    %165 = vector.broadcast %cst_43 : f32 to vector<8x1xf32>
    %166 = arith.divf %164, %165 : vector<8x1xf32>
    %167 = arith.mulf %161, %161 : vector<8x1xf32>
    %168 = arith.subf %166, %167 : vector<8x1xf32>
    %cst_44 = arith.constant 0.000000e+00 : f32
    %169 = vector.broadcast %cst_44 : f32 to vector<8x1xf32>
    %170 = arith.maximumf %168, %169 : vector<8x1xf32>
    %cst_45 = arith.constant 9.99999974E-6 : f32
    %171 = vector.broadcast %cst_45 : f32 to vector<8x1xf32>
    %172 = arith.addf %170, %171 : vector<8x1xf32>
    %173 = math.rsqrt %172 : vector<8x1xf32>
    %174 = vector.broadcast %173 : vector<8x1xf32> to vector<8x128xf32>
    %175 = vector.broadcast %156 : vector<1x128xf32> to vector<8x128xf32>
    %176 = arith.mulf %174, %175 : vector<8x128xf32>
    %177 = arith.mulf %155, %176 : vector<8x128xf32>
    %178 = vector.broadcast %161 : vector<8x1xf32> to vector<8x128xf32>
    %179 = arith.mulf %178, %176 : vector<8x128xf32>
    %180 = vector.broadcast %157 : vector<1x128xf32> to vector<8x128xf32>
    %181 = arith.subf %180, %179 : vector<8x128xf32>
    %182 = arith.addf %177, %181 : vector<8x128xf32>
    %c0_46 = arith.constant 0 : index
    %c0_47 = arith.constant 0 : index
    %c0_48 = arith.constant 0 : index
    %183 = vector.load %arg9[%c0_46, %c0_47, %c0_48] : memref<1x128x512xbf16, #tpu.memory_space<vmem>>, vector<1x128x512xbf16>
    %184 = vector.shape_cast %183 : vector<1x128x512xbf16> to vector<128x512xbf16>
    %185 = arith.truncf %182 : vector<8x128xf32> to vector<8x128xbf16>
    %cst_49 = arith.constant dense<0.000000e+00> : vector<8x512xf32>
    %186 = tpu.matmul %185, %184, %cst_49 {dimension_numbers = #tpu.dot_dimension_numbers<[1], [0], [0], [1], [0, 0, 1, 1], [], []>} : vector<8x128xbf16>, vector<128x512xbf16>, vector<8x512xf32> -> vector<8x512xf32>
    %c0_50 = arith.constant 0 : index
    %c0_51 = arith.constant 0 : index
    %c0_52 = arith.constant 0 : index
    %187 = vector.load %arg10[%c0_50, %c0_51, %c0_52] : memref<1x8x512xf32, #tpu.memory_space<vmem>>, vector<1x8x512xf32>
    %188 = vector.shape_cast %187 : vector<1x8x512xf32> to vector<8x512xf32>
    %189 = vector.extract_strided_slice %188 {offsets = [0, 0], sizes = [1, 512], strides = [1, 1]} : vector<8x512xf32> to vector<1x512xf32>
    %190 = vector.broadcast %189 : vector<1x512xf32> to vector<8x512xf32>
    %191 = arith.addf %186, %190 : vector<8x512xf32>
    %cst_53 = arith.constant 1.702000e+00 : f32
    %192 = vector.broadcast %cst_53 : f32 to vector<8x512xf32>
    %193 = arith.mulf %192, %191 : vector<8x512xf32>
    %194 = arith.negf %193 : vector<8x512xf32>
    %195 = math.exp %194 : vector<8x512xf32>
    %cst_54 = arith.constant 1.000000e+00 : f32
    %196 = vector.broadcast %cst_54 : f32 to vector<8x512xf32>
    %197 = arith.addf %196, %195 : vector<8x512xf32>
    %198 = arith.divf %196, %197 : vector<8x512xf32>
    %199 = arith.mulf %191, %198 : vector<8x512xf32>
    %c0_55 = arith.constant 0 : index
    %c0_56 = arith.constant 0 : index
    %c0_57 = arith.constant 0 : index
    %200 = vector.load %arg11[%c0_55, %c0_56, %c0_57] : memref<1x512x128xbf16, #tpu.memory_space<vmem>>, vector<1x512x128xbf16>
    %201 = vector.shape_cast %200 : vector<1x512x128xbf16> to vector<512x128xbf16>
    %202 = arith.truncf %199 : vector<8x512xf32> to vector<8x512xbf16>
    %cst_58 = arith.constant dense<0.000000e+00> : vector<8x128xf32>
    %203 = tpu.matmul %202, %201, %cst_58 {dimension_numbers = #tpu.dot_dimension_numbers<[1], [0], [0], [1], [0, 0, 1, 1], [], []>} : vector<8x512xbf16>, vector<512x128xbf16>, vector<8x128xf32> -> vector<8x128xf32>
    %204 = arith.addf %155, %203 : vector<8x128xf32>
    %205 = vector.extract_strided_slice %5 {offsets = [8, 0], sizes = [1, 128], strides = [1, 1]} : vector<16x128xf32> to vector<1x128xf32>
    %206 = vector.broadcast %205 : vector<1x128xf32> to vector<8x128xf32>
    %207 = arith.addf %204, %206 : vector<8x128xf32>
    %c0_59 = arith.constant 0 : index
    %c0_60 = arith.constant 0 : index
    %208 = vector.load %arg12[%c0_59, %c0_60] : memref<8x128xf32, #tpu.memory_space<vmem>>, vector<8x128xf32>
    tpu.vector_store %arg12[%c0_59, %c0_60], %207 {strides = array<i32>} : memref<8x128xf32, #tpu.memory_space<vmem>>, vector<8x128xf32>,
    return
  }
  func.func @transform_0(%arg0: i32, %arg1: i32) -> (i32, i32) {
    %c0_i32 = arith.constant 0 : i32
    %c0_i32_0 = arith.constant 0 : i32
    return %arg0, %c0_i32 : i32, i32
  }
  func.func @transform_1(%arg0: i32, %arg1: i32) -> (i32, i32) {
    %c0_i32 = arith.constant 0 : i32
    %c0_i32_0 = arith.constant 0 : i32
    %c0_i32_1 = arith.constant 0 : i32
    return %c0_i32, %c0_i32_0 : i32, i32
  }
  func.func @transform_2(%arg0: i32, %arg1: i32) -> (i32, i32) {
    %c0_i32 = arith.constant 0 : i32
    %c0_i32_0 = arith.constant 0 : i32
    %c0_i32_1 = arith.constant 0 : i32
    return %c0_i32, %c0_i32_0 : i32, i32
  }
  func.func @transform_3(%arg0: i32, %arg1: i32) -> (i32, i32) {
    %c0_i32 = arith.constant 0 : i32
    %c0_i32_0 = arith.constant 0 : i32
    %c0_i32_1 = arith.constant 0 : i32
    return %c0_i32, %c0_i32_0 : i32, i32
  }
  func.func @transform_4(%arg0: i32, %arg1: i32) -> (i32, i32, i32) {
    %c0_i32 = arith.constant 0 : i32
    %c0_i32_0 = arith.constant 0 : i32
    %c0_i32_1 = arith.constant 0 : i32
    return %arg1, %c0_i32, %c0_i32_0 : i32, i32, i32
  }
  func.func @transform_5(%arg0: i32, %arg1: i32) -> (i32, i32, i32) {
    %c0_i32 = arith.constant 0 : i32
    %c0_i32_0 = arith.constant 0 : i32
    %c0_i32_1 = arith.constant 0 : i32
    return %arg1, %c0_i32, %c0_i32_0 : i32, i32, i32
  }
  func.func @transform_6(%arg0: i32, %arg1: i32) -> (i32, i32, i32) {
    %c0_i32 = arith.constant 0 : i32
    %c0_i32_0 = arith.constant 0 : i32
    %c0_i32_1 = arith.constant 0 : i32
    return %arg1, %c0_i32, %c0_i32_0 : i32, i32, i32
  }
  func.func @transform_7(%arg0: i32, %arg1: i32) -> (i32, i32, i32) {
    %c0_i32 = arith.constant 0 : i32
    %c0_i32_0 = arith.constant 0 : i32
    %c0_i32_1 = arith.constant 0 : i32
    return %arg1, %c0_i32, %c0_i32_0 : i32, i32, i32
  }
  func.func @transform_8(%arg0: i32, %arg1: i32) -> (i32, i32, i32) {
    %c0_i32 = arith.constant 0 : i32
    %c0_i32_0 = arith.constant 0 : i32
    %c0_i32_1 = arith.constant 0 : i32
    return %arg1, %c0_i32, %c0_i32_0 : i32, i32, i32
  }
  func.func @transform_9(%arg0: i32, %arg1: i32) -> (i32, i32, i32) {
    %c0_i32 = arith.constant 0 : i32
    %c0_i32_0 = arith.constant 0 : i32
    %c0_i32_1 = arith.constant 0 : i32
    return %arg1, %c0_i32, %c0_i32_0 : i32, i32, i32
  }
  func.func @transform_10(%arg0: i32, %arg1: i32) -> (i32, i32) {
    %c0_i32 = arith.constant 0 : i32
    %c0_i32_0 = arith.constant 0 : i32
    return %arg0, %c0_i32 : i32, i32
  }
}

</mosaic_0001>

<llo_original>
// kernel: tpu_custom_call.1
$region0: #{tpu_custom_call.1}
  #allocation0 [shape = 'u32[]', space=smem, size = 0x4, offset = 0x4, fixed_abs, tag = 'smem constant byte address 0x4 - core index']
  #allocation1 [shape = 'u32[72,128]{1,0:T(1,128)}', space=vmem, size = 0x9000, scoped, tag = 'internal scratch']
  %s0 = inlined_call_operand.hbm [shape: bf16[16,256], index: 0, kind: input, shape index: {}]
  %s1 = inlined_call_operand.hbm [shape: f32[8,128], index: 1, kind: input, shape index: {}]
  %s2 = inlined_call_operand.hbm [shape: bf16[256,128], index: 2, kind: input, shape index: {}]
  %s3 = inlined_call_operand.hbm [shape: f32[8,128], index: 3, kind: input, shape index: {}]
  %s4 = inlined_call_operand.hbm [shape: f32[2,16,128], index: 4, kind: input, shape index: {}]
  %s5 = inlined_call_operand.hbm [shape: bf16[2,128,384], index: 5, kind: input, shape index: {}]
  %s6 = inlined_call_operand.hbm [shape: bf16[2,128,128], index: 6, kind: input, shape index: {}]
  %s7 = inlined_call_operand.hbm [shape: bf16[2,128,512], index: 7, kind: input, shape index: {}]
  %s8 = inlined_call_operand.hbm [shape: f32[2,8,512], index: 8, kind: input, shape index: {}]
  %s9 = inlined_call_operand.hbm [shape: bf16[2,512,128], index: 9, kind: input, shape index: {}]
  %s10 = inlined_call_operand.hbm [shape: f32[16,128], index: 10, kind: output, shape index: {}]
  %s11 = sld [smem:[#allocation0]]
  $region117: #{tpu_custom_call.1} parent=0
    _
  %s13 = ssub.s32 1, %s11
  %s14 = scalar_select 0, %s13, %s11
  $region1: #{tpu_custom_call.1} parent=0
    #allocation2 [shape = 'u8[8192]{0}', space=vmem, size = 0x2000, scoped, tag = 'input window, operand 0']
    #allocation3 [shape = 's32[2]{0}', space=sflag, size = 0x8, scoped, tag = 'scoped memory for tpu_custom_call.1']
    #allocation4 [shape = 's32[2]{0}', space=sflag, size = 0x8, scoped, tag = 'scoped memory for tpu_custom_call.1']
    #allocation5 [shape = 'u8[4096]{0}', space=vmem, size = 0x1000, scoped, tag = 'input window, operand 1, single buffered']
    #allocation6 [shape = 's32[1]{0}', space=sflag, size = 0x4, scoped, tag = 'scoped memory for tpu_custom_call.1']
    #allocation7 [shape = 'u8[65536]{0}', space=vmem, size = 0x10000, scoped, tag = 'input window, operand 2, single buffered']
    #allocation8 [shape = 'u8[4096]{0}', space=vmem, size = 0x1000, scoped, tag = 'input window, operand 3, single buffered']
    #allocation9 [shape = 's32[1]{0}', space=sflag, size = 0x4, scoped, tag = 'scoped memory for tpu_custom_call.1']
    #allocation10 [shape = 'u8[16384]{0}', space=vmem, size = 0x4000, scoped, tag = 'input window, operand 4']
    #allocation11 [shape = 'u8[196608]{0}', space=vmem, size = 0x30000, scoped, tag = 'input window, operand 5']
    #allocation12 [shape = 'u8[65536]{0}', space=vmem, size = 0x10000, scoped, tag = 'input window, operand 6']
    #allocation13 [shape = 'u8[262144]{0}', space=vmem, size = 0x40000, scoped, tag = 'input window, operand 7']
    #allocation14 [shape = 'u8[32768]{0}', space=vmem, size = 0x8000, scoped, tag = 'input window, operand 8']
    #allocation15 [shape = 'u8[262144]{0}', space=vmem, size = 0x40000, scoped, tag = 'input window, operand 9']
    #allocation16 [shape = 'u8[8192]{0}', space=vmem, size = 0x2000, scoped, tag = 'output window, operand 0']
    %15 = vsyncpa [#allocation3], 0
    %s16 = scalar_lea.sflag [#allocation3], 1
    %17 = vsyncpa %s16, 0
    %18 = vsyncpa [#allocation6], 0
    %19 = vsyncpa [#allocation9], 0
    %20 = vsyncpa [#allocation4], 0
    %s21 = scalar_lea.sflag [#allocation4], 1
    %22 = vsyncpa %s21, 0
    loop: start=0, step=1, limit=6
    $region2: #{tpu_custom_call.1} parent=1 // loop_pre_header
      _
    $region3: #{tpu_custom_call.1} parent=1 // loop_header
      %s24 = sphi 0, %s28
      %p25 = scmp.ge.s32.totalorder %s24, 6
      %s31 = sphi 0, %s43
      %s32 = sphi 0, %s39
      %s33 = sphi 0, %s31
      %s34 = sphi 0, %s32
      %s35 = sphi 0, %s33
      %s36 = sphi 0, %s34
      %s46 = sphi 0, %s48
      %s49 = sphi 0, %s46
      %s50 = sphi 0, %s49
      %s66 = sphi 0, %s50
      %s70 = sphi 0, %s70
      %s72 = sphi 0, %s70
      %s73 = sphi 0, %s72
      %s87 = sphi 0, %s73
      %s91 = sphi 0, %s91
      %s93 = sphi 0, %s91
      %s94 = sphi 0, %s93
      %s108 = sphi 0, %s94
      %s112 = sphi 0, %s112
      %s114 = sphi 0, %s112
      %s115 = sphi 0, %s114
      %s129 = sphi 0, %s115
      %s135 = sphi 0, %s137
      %s138 = sphi 0, %s135
      %s139 = sphi 0, %s138
      %s155 = sphi 0, %s139
      %s161 = sphi 0, %s163
      %s164 = sphi 0, %s161
      %s165 = sphi 0, %s164
      %s181 = sphi 0, %s165
      %s187 = sphi 0, %s189
      %s190 = sphi 0, %s187
      %s191 = sphi 0, %s190
      %s207 = sphi 0, %s191
      %s213 = sphi 0, %s215
      %s216 = sphi 0, %s213
      %s217 = sphi 0, %s216
      %s233 = sphi 0, %s217
      %s239 = sphi 0, %s241
      %s242 = sphi 0, %s239
      %s243 = sphi 0, %s242
      %s259 = sphi 0, %s243
      %s265 = sphi 0, %s267
      %s268 = sphi 0, %s265
      %s269 = sphi 0, %s268
      %s285 = sphi 0, %s269
      %s291 = sphi 0, %s293
      %s294 = sphi 0, %s291
      %s295 = sphi 0, %s294
      %s311 = sphi 0, %s295
    $region4: #{tpu_custom_call.1} parent=1 // loop_header_branch
      %27 = sbr.rel (%p25) target = $region8
    $region5: #{tpu_custom_call.1} parent=1 // loop_body
      %s29 = ssub.s32 %s24, 1
      %s30 = ssub.s32 %s24, 2
      %s37 = sadd.s32 1, %s32
      %p38 = scmp.ge.s32.totalorder %s37, 2
      %s39 = scalar_select %p38, 0, %s37
      %s40 = sadd.s32 1, %s31
      %s41 = scalar_select %p38, %s40, %s31
      %p42 = scmp.ge.s32.totalorder %s41, 2
      %s43 = scalar_select %p42, 0, %s41
      %s44 = ssub.s32 %s31, %s43
      %p45 = scmp.eq.s32.totalorder %s44, 0
      %s47 = sadd.s32 %s46, 1
      %s48 = scalar_select %p45, %s46, %s47
      %p51 = pneg %p45
      %p52 = scmp.eq.s32.totalorder %s24, 3
      %p53 = por %p51, %p52
      %p54 = scmp.ne.s32.totalorder %s46, %s49
      %p55 = scmp.eq.s32.totalorder %s24, 0
      %p56 = por %p54, %p55
      %p57 = scmp.ne.s32.totalorder %s46, %s49
      %p58 = scmp.eq.s32.totalorder %s29, 3
      %p59 = por %p57, %p58
      %p60 = scmp.ne.s32.totalorder %s49, %s50
      %p61 = scmp.eq.s32.totalorder %s29, 0
      %p62 = por %p60, %p61
      %p63 = scmp.ne.s32.totalorder %s49, %s50
      %p64 = scmp.eq.s32.totalorder %s30, 3
      %p65 = por %p63, %p64
      %p67 = scmp.ne.s32.totalorder %s50, %s66
      %p68 = scmp.eq.s32.totalorder %s30, 0
      %p69 = por %p67, %p68
      %s71 = sadd.s32 %s70, 1
      %p74 = scmp.eq.s32.totalorder %s24, 3
      %p75 = scmp.ne.s32.totalorder %s70, %s72
      %p76 = scmp.eq.s32.totalorder %s24, 0
      %p77 = por %p75, %p76
      %p78 = scmp.ne.s32.totalorder %s70, %s72
      %p79 = scmp.eq.s32.totalorder %s29, 3
      %p80 = por %p78, %p79
      %p81 = scmp.ne.s32.totalorder %s72, %s73
      %p82 = scmp.eq.s32.totalorder %s29, 0
      %p83 = por %p81, %p82
      %p84 = scmp.ne.s32.totalorder %s72, %s73
      %p85 = scmp.eq.s32.totalorder %s30, 3
      %p86 = por %p84, %p85
      %p88 = scmp.ne.s32.totalorder %s73, %s87
      %p89 = scmp.eq.s32.totalorder %s30, 0
      %p90 = por %p88, %p89
      %s92 = sadd.s32 %s91, 1
      %p95 = scmp.eq.s32.totalorder %s24, 3
      %p96 = scmp.ne.s32.totalorder %s91, %s93
      %p97 = scmp.eq.s32.totalorder %s24, 0
      %p98 = por %p96, %p97
      %p99 = scmp.ne.s32.totalorder %s91, %s93
      %p100 = scmp.eq.s32.totalorder %s29, 3
      %p101 = por %p99, %p100
      %p102 = scmp.ne.s32.totalorder %s93, %s94
      %p103 = scmp.eq.s32.totalorder %s29, 0
      %p104 = por %p102, %p103
      %p105 = scmp.ne.s32.totalorder %s93, %s94
      %p106 = scmp.eq.s32.totalorder %s30, 3
      %p107 = por %p105, %p106
      %p109 = scmp.ne.s32.totalorder %s94, %s108
      %p110 = scmp.eq.s32.totalorder %s30, 0
      %p111 = por %p109, %p110
      %s113 = sadd.s32 %s112, 1
      %p116 = scmp.eq.s32.totalorder %s24, 3
      %p117 = scmp.ne.s32.totalorder %s112, %s114
      %p118 = scmp.eq.s32.totalorder %s24, 0
      %p119 = por %p117, %p118
      %p120 = scmp.ne.s32.totalorder %s112, %s114
      %p121 = scmp.eq.s32.totalorder %s29, 3
      %p122 = por %p120, %p121
      %p123 = scmp.ne.s32.totalorder %s114, %s115
      %p124 = scmp.eq.s32.totalorder %s29, 0
      %p125 = por %p123, %p124
      %p126 = scmp.ne.s32.totalorder %s114, %s115
      %p127 = scmp.eq.s32.totalorder %s30, 3
      %p128 = por %p126, %p127
      %p130 = scmp.ne.s32.totalorder %s115, %s129
      %p131 = scmp.eq.s32.totalorder %s30, 0
      %p132 = por %p130, %p131
      %s133 = ssub.s32 %s32, %s39
      %p134 = scmp.eq.s32.totalorder %s133, 0
      %s136 = sadd.s32 %s135, 1
      %s137 = scalar_select %p134, %s135, %s136
      %p140 = pneg %p134
      %p141 = scmp.eq.s32.totalorder %s24, 3
      %p142 = por %p140, %p141
      %p143 = scmp.ne.s32.totalorder %s135, %s138
      %p144 = scmp.eq.s32.totalorder %s24, 0
      %p145 = por %p143, %p144
      %p146 = scmp.ne.s32.totalorder %s135, %s138
      %p147 = scmp.eq.s32.totalorder %s29, 3
      %p148 = por %p146, %p147
      %p149 = scmp.ne.s32.totalorder %s138, %s139
      %p150 = scmp.eq.s32.totalorder %s29, 0
      %p151 = por %p149, %p150
      %p152 = scmp.ne.s32.totalorder %s138, %s139
      %p153 = scmp.eq.s32.totalorder %s30, 3
      %p154 = por %p152, %p153
      %p156 = scmp.ne.s32.totalorder %s139, %s155
      %p157 = scmp.eq.s32.totalorder %s30, 0
      %p158 = por %p156, %p157
      %s159 = ssub.s32 %s32, %s39
      %p160 = scmp.eq.s32.totalorder %s159, 0
      %s162 = sadd.s32 %s161, 1
      %s163 = scalar_select %p160, %s161, %s162
      %p166 = pneg %p160
      %p167 = scmp.eq.s32.totalorder %s24, 3
      %p168 = por %p166, %p167
      %p169 = scmp.ne.s32.totalorder %s161, %s164
      %p170 = scmp.eq.s32.totalorder %s24, 0
      %p171 = por %p169, %p170
      %p172 = scmp.ne.s32.totalorder %s161, %s164
      %p173 = scmp.eq.s32.totalorder %s29, 3
      %p174 = por %p172, %p173
      %p175 = scmp.ne.s32.totalorder %s164, %s165
      %p176 = scmp.eq.s32.totalorder %s29, 0
      %p177 = por %p175, %p176
      %p178 = scmp.ne.s32.totalorder %s164, %s165
      %p179 = scmp.eq.s32.totalorder %s30, 3
      %p180 = por %p178, %p179
      %p182 = scmp.ne.s32.totalorder %s165, %s181
      %p183 = scmp.eq.s32.totalorder %s30, 0
      %p184 = por %p182, %p183
      %s185 = ssub.s32 %s32, %s39
      %p186 = scmp.eq.s32.totalorder %s185, 0
      %s188 = sadd.s32 %s187, 1
      %s189 = scalar_select %p186, %s187, %s188
      %p192 = pneg %p186
      %p193 = scmp.eq.s32.totalorder %s24, 3
      %p194 = por %p192, %p193
      %p195 = scmp.ne.s32.totalorder %s187, %s190
      %p196 = scmp.eq.s32.totalorder %s24, 0
      %p197 = por %p195, %p196
      %p198 = scmp.ne.s32.totalorder %s187, %s190
      %p199 = scmp.eq.s32.totalorder %s29, 3
      %p200 = por %p198, %p199
      %p201 = scmp.ne.s32.totalorder %s190, %s191
      %p202 = scmp.eq.s32.totalorder %s29, 0
      %p203 = por %p201, %p202
      %p204 = scmp.ne.s32.totalorder %s190, %s191
      %p205 = scmp.eq.s32.totalorder %s30, 3
      %p206 = por %p204, %p205
      %p208 = scmp.ne.s32.totalorder %s191, %s207
      %p209 = scmp.eq.s32.totalorder %s30, 0
      %p210 = por %p208, %p209
      %s211 = ssub.s32 %s32, %s39
      %p212 = scmp.eq.s32.totalorder %s211, 0
      %s214 = sadd.s32 %s213, 1
      %s215 = scalar_select %p212, %s213, %s214
      %p218 = pneg %p212
      %p219 = scmp.eq.s32.totalorder %s24, 3
      %p220 = por %p218, %p219
      %p221 = scmp.ne.s32.totalorder %s213, %s216
      %p222 = scmp.eq.s32.totalorder %s24, 0
      %p223 = por %p221, %p222
      %p224 = scmp.ne.s32.totalorder %s213, %s216
      %p225 = scmp.eq.s32.totalorder %s29, 3
      %p226 = por %p224, %p225
      %p227 = scmp.ne.s32.totalorder %s216, %s217
      %p228 = scmp.eq.s32.totalorder %s29, 0
      %p229 = por %p227, %p228
      %p230 = scmp.ne.s32.totalorder %s216, %s217
      %p231 = scmp.eq.s32.totalorder %s30, 3
      %p232 = por %p230, %p231
      %p234 = scmp.ne.s32.totalorder %s217, %s233
      %p235 = scmp.eq.s32.totalorder %s30, 0
      %p236 = por %p234, %p235
      %s237 = ssub.s32 %s32, %s39
      %p238 = scmp.eq.s32.totalorder %s237, 0
      %s240 = sadd.s32 %s239, 1
      %s241 = scalar_select %p238, %s239, %s240
      %p244 = pneg %p238
      %p245 = scmp.eq.s32.totalorder %s24, 3
      %p246 = por %p244, %p245
      %p247 = scmp.ne.s32.totalorder %s239, %s242
      %p248 = scmp.eq.s32.totalorder %s24, 0
      %p249 = por %p247, %p248
      %p250 = scmp.ne.s32.totalorder %s239, %s242
      %p251 = scmp.eq.s32.totalorder %s29, 3
      %p252 = por %p250, %p251
      %p253 = scmp.ne.s32.totalorder %s242, %s243
      %p254 = scmp.eq.s32.totalorder %s29, 0
      %p255 = por %p253, %p254
      %p256 = scmp.ne.s32.totalorder %s242, %s243
      %p257 = scmp.eq.s32.totalorder %s30, 3
      %p258 = por %p256, %p257
      %p260 = scmp.ne.s32.totalorder %s243, %s259
      %p261 = scmp.eq.s32.totalorder %s30, 0
      %p262 = por %p260, %p261
      %s263 = ssub.s32 %s32, %s39
      %p264 = scmp.eq.s32.totalorder %s263, 0
      %s266 = sadd.s32 %s265, 1
      %s267 = scalar_select %p264, %s265, %s266
      %p270 = pneg %p264
      %p271 = scmp.eq.s32.totalorder %s24, 3
      %p272 = por %p270, %p271
      %p273 = scmp.ne.s32.totalorder %s265, %s268
      %p274 = scmp.eq.s32.totalorder %s24, 0
      %p275 = por %p273, %p274
      %p276 = scmp.ne.s32.totalorder %s265, %s268
      %p277 = scmp.eq.s32.totalorder %s29, 3
      %p278 = por %p276, %p277
      %p279 = scmp.ne.s32.totalorder %s268, %s269
      %p280 = scmp.eq.s32.totalorder %s29, 0
      %p281 = por %p279, %p280
      %p282 = scmp.ne.s32.totalorder %s268, %s269
      %p283 = scmp.eq.s32.totalorder %s30, 3
      %p284 = por %p282, %p283
      %p286 = scmp.ne.s32.totalorder %s269, %s285
      %p287 = scmp.eq.s32.totalorder %s30, 0
      %p288 = por %p286, %p287
      %s289 = ssub.s32 %s31, %s43
      %p290 = scmp.eq.s32.totalorder %s289, 0
      %s292 = sadd.s32 %s291, 1
      %s293 = scalar_select %p290, %s291, %s292
      %p296 = pneg %p290
      %p297 = scmp.eq.s32.totalorder %s24, 3
      %p298 = por %p296, %p297
      %p299 = scmp.ne.s32.totalorder %s291, %s294
      %p300 = scmp.eq.s32.totalorder %s24, 0
      %p301 = por %p299, %p300
      %p302 = scmp.ne.s32.totalorder %s291, %s294
      %p303 = scmp.eq.s32.totalorder %s29, 3
      %p304 = por %p302, %p303
      %p305 = scmp.ne.s32.totalorder %s294, %s295
      %p306 = scmp.eq.s32.totalorder %s29, 0
      %p307 = por %p305, %p306
      %p308 = scmp.ne.s32.totalorder %s294, %s295
      %p309 = scmp.eq.s32.totalorder %s30, 3
      %p310 = por %p308, %p309
      %p312 = scmp.ne.s32.totalorder %s295, %s311
      %p313 = scmp.eq.s32.totalorder %s30, 0
      %p314 = por %p312, %p313
      %p315 = scmp.le.s32.totalorder 1, %s24
      %p316 = scmp.lt.s32.totalorder %s24, 5
      %p317 = pnand %p315, %p316
      %p318 = pneg %p317
      // Predicated region
      $region9: #{tpu_custom_call.1} parent=5 // pred_check
        _
      $region10: #{tpu_custom_call.1} parent=5 // pred_check_branch
        %320 = sbr.rel (%p317) target = $region12
      $region11: #{tpu_custom_call.1} parent=5 // pred_region
        %s321 = ssub.s32 %s24, 1
        // Predicated region
        $region13: #{tpu_custom_call.1} parent=11 // pred_check
          %p322 = pneg %p83
        $region14: #{tpu_custom_call.1} parent=11 // pred_check_branch
          %324 = sbr.rel (%p322) target = $region16
        $region15: #{tpu_custom_call.1} parent=11 // pred_region
          %326 = vsyncadd [#allocation6], 0
          %s328 = sshll.u32 %s1, 4
          %s329 = int_to_ptr.hbm [resolvable:$true] %s328
          %s330 = sshll.u32 [#allocation5], 4
          %s331 = int_to_ptr.vmem [resolvable:$true] %s330
          %333 = dma.hbm_to_vmem [thread:$0]  %s329, 128, %s331, [#allocation6]
        $region16: #{tpu_custom_call.1} parent=11 // pred_fallthru
          _
        // Predicated region
        $region17: #{tpu_custom_call.1} parent=11 // pred_check
          %p334 = pneg %p104
        $region18: #{tpu_custom_call.1} parent=11 // pred_check_branch
          %336 = sbr.rel (%p334) target = $region20
        $region19: #{tpu_custom_call.1} parent=11 // pred_region
          %338 = vsyncadd [#allocation6], 0
          %s339 = sshll.u32 %s2, 4
          %s340 = int_to_ptr.hbm [resolvable:$true] %s339
          %s341 = sshll.u32 [#allocation7], 4
          %s342 = int_to_ptr.vmem [resolvable:$true] %s341
          %347 = dma.hbm_to_vmem [thread:$0]  %s340, 2048, %s342, [#allocation6], 64, 64, 4
        $region20: #{tpu_custom_call.1} parent=11 // pred_fallthru
          _
        // Predicated region
        $region21: #{tpu_custom_call.1} parent=11 // pred_check
          %p348 = pneg %p125
        $region22: #{tpu_custom_call.1} parent=11 // pred_check_branch
          %350 = sbr.rel (%p348) target = $region24
        $region23: #{tpu_custom_call.1} parent=11 // pred_region
          %352 = vsyncadd [#allocation9], 0
          %s354 = sshll.u32 %s3, 4
          %s355 = int_to_ptr.hbm [resolvable:$true] %s354
          %s356 = sshll.u32 [#allocation8], 4
          %s357 = int_to_ptr.vmem [resolvable:$true] %s356
          %359 = dma.hbm_to_vmem [thread:$0]  %s355, 128, %s357, [#allocation9]
        $region24: #{tpu_custom_call.1} parent=11 // pred_fallthru
          _
      $region12: #{tpu_custom_call.1} parent=5 // pred_fallthru
        _
      %p360 = scmp.lt.s32.totalorder %s24, 4
      // Predicated region
      $region25: #{tpu_custom_call.1} parent=5 // pred_check
        %p361 = pneg %p360
      $region26: #{tpu_custom_call.1} parent=5 // pred_check_branch
        %363 = sbr.rel (%p361) target = $region28
      $region27: #{tpu_custom_call.1} parent=5 // pred_region
        // Predicated region
        $region29: #{tpu_custom_call.1} parent=27 // pred_check
          %p364 = pneg %p56
        $region30: #{tpu_custom_call.1} parent=27 // pred_check_branch
          %366 = sbr.rel (%p364) target = $region32
        $region31: #{tpu_custom_call.1} parent=27 // pred_region
          %s367 = sand.u32 %s24, 1
          %s368 = scalar_lea.sflag [#allocation3], %s367
          %s369 = sand.u32 %s46, 1
          %s370 = smul.addr %s369, 8
          %s371 = scalar_lea.vmem [#allocation2], %s370
          %373 = vsyncadd %s368, 0
          %s374 = smul.addr %s31, 2
          %s375 = smul.addr %s374, 4
          %s376 = scalar_lea.hbm %s0, %s375
          %s378 = sshll.u32 %s376, 4
          %s379 = int_to_ptr.hbm [resolvable:$true] %s378
          %s380 = sshll.u32 %s371, 4
          %s381 = int_to_ptr.vmem [resolvable:$true] %s380
          %383 = dma.hbm_to_vmem [thread:$0]  %s379, 128, %s381, %s368
        $region32: #{tpu_custom_call.1} parent=27 // pred_fallthru
          _
        // Predicated region
        $region33: #{tpu_custom_call.1} parent=27 // pred_check
          %p384 = pneg %p145
        $region34: #{tpu_custom_call.1} parent=27 // pred_check_branch
          %386 = sbr.rel (%p384) target = $region36
        $region35: #{tpu_custom_call.1} parent=27 // pred_region
          %s387 = sand.u32 %s24, 1
          %s388 = scalar_lea.sflag [#allocation3], %s387
          %s389 = sand.u32 %s135, 1
          %s390 = smul.addr %s389, 16
          %s391 = scalar_lea.vmem [#allocation10], %s390
          %393 = vsyncadd %s388, 0
          %s394 = smul.addr %s32, 2
          %s395 = smul.addr %s394, 8
          %s396 = scalar_lea.hbm %s4, %s395
          %s397 = sshll.u32 %s396, 4
          %s398 = int_to_ptr.hbm [resolvable:$true] %s397
          %s399 = sshll.u32 %s391, 4
          %s400 = int_to_ptr.vmem [resolvable:$true] %s399
          %405 = dma.hbm_to_vmem [thread:$0]  %s398, 256, %s400, %s388, 128, 128, 8
        $region36: #{tpu_custom_call.1} parent=27 // pred_fallthru
          _
        // Predicated region
        $region37: #{tpu_custom_call.1} parent=27 // pred_check
          %p406 = pneg %p171
        $region38: #{tpu_custom_call.1} parent=27 // pred_check_branch
          %408 = sbr.rel (%p406) target = $region40
        $region39: #{tpu_custom_call.1} parent=27 // pred_region
          %s409 = sand.u32 %s24, 1
          %s410 = scalar_lea.sflag [#allocation3], %s409
          %s411 = sand.u32 %s161, 1
          %s412 = smul.addr %s411, 192
          %s413 = scalar_lea.vmem [#allocation11], %s412
          %415 = vsyncadd %s410, 0
          %s416 = smul.addr %s32, 48
          %s417 = smul.addr %s416, 4
          %s418 = scalar_lea.hbm %s5, %s417
          %s419 = sshll.u32 %s418, 4
          %s420 = int_to_ptr.hbm [resolvable:$true] %s419
          %s421 = sshll.u32 %s413, 4
          %s422 = int_to_ptr.vmem [resolvable:$true] %s421
          %427 = dma.hbm_to_vmem [thread:$0]  %s420, 3072, %s422, %s410, 192, 192, 12
        $region40: #{tpu_custom_call.1} parent=27 // pred_fallthru
          _
        // Predicated region
        $region41: #{tpu_custom_call.1} parent=27 // pred_check
          %p428 = pneg %p197
        $region42: #{tpu_custom_call.1} parent=27 // pred_check_branch
          %430 = sbr.rel (%p428) target = $region44
        $region43: #{tpu_custom_call.1} parent=27 // pred_region
          %s431 = sand.u32 %s24, 1
          %s432 = scalar_lea.sflag [#allocation3], %s431
          %s433 = sand.u32 %s187, 1
          %s434 = smul.addr %s433, 64
          %s435 = scalar_lea.vmem [#allocation12], %s434
          %437 = vsyncadd %s432, 0
          %s438 = smul.addr %s32, 16
          %s439 = smul.addr %s438, 4
          %s440 = scalar_lea.hbm %s6, %s439
          %s441 = sshll.u32 %s440, 4
          %s442 = int_to_ptr.hbm [resolvable:$true] %s441
          %s443 = sshll.u32 %s435, 4
          %s444 = int_to_ptr.vmem [resolvable:$true] %s443
          %449 = dma.hbm_to_vmem [thread:$0]  %s442, 1024, %s444, %s432, 64, 64, 4
        $region44: #{tpu_custom_call.1} parent=27 // pred_fallthru
          _
        // Predicated region
        $region45: #{tpu_custom_call.1} parent=27 // pred_check
          %p450 = pneg %p223
        $region46: #{tpu_custom_call.1} parent=27 // pred_check_branch
          %452 = sbr.rel (%p450) target = $region48
        $region47: #{tpu_custom_call.1} parent=27 // pred_region
          %s453 = sand.u32 %s24, 1
          %s454 = scalar_lea.sflag [#allocation3], %s453
          %s455 = sand.u32 %s213, 1
          %s456 = smul.addr %s455, 256
          %s457 = scalar_lea.vmem [#allocation13], %s456
          %459 = vsyncadd %s454, 0
          %s460 = smul.addr %s32, 64
          %s461 = smul.addr %s460, 4
          %s462 = scalar_lea.hbm %s7, %s461
          %s463 = sshll.u32 %s462, 4
          %s464 = int_to_ptr.hbm [resolvable:$true] %s463
          %s465 = sshll.u32 %s457, 4
          %s466 = int_to_ptr.vmem [resolvable:$true] %s465
          %471 = dma.hbm_to_vmem [thread:$0]  %s464, 4096, %s466, %s454, 256, 256, 16
        $region48: #{tpu_custom_call.1} parent=27 // pred_fallthru
          _
        // Predicated region
        $region49: #{tpu_custom_call.1} parent=27 // pred_check
          %p472 = pneg %p249
        $region50: #{tpu_custom_call.1} parent=27 // pred_check_branch
          %474 = sbr.rel (%p472) target = $region52
        $region51: #{tpu_custom_call.1} parent=27 // pred_region
          %s475 = sand.u32 %s24, 1
          %s476 = scalar_lea.sflag [#allocation3], %s475
          %s477 = sand.u32 %s239, 1
          %s478 = smul.addr %s477, 32
          %s479 = scalar_lea.vmem [#allocation14], %s478
          %481 = vsyncadd %s476, 0
          %s482 = smul.addr %s32, 4
          %s483 = smul.addr %s482, 8
          %s484 = scalar_lea.hbm %s8, %s483
          %s486 = sshll.u32 %s484, 4
          %s487 = int_to_ptr.hbm [resolvable:$true] %s486
          %s488 = sshll.u32 %s479, 4
          %s489 = int_to_ptr.vmem [resolvable:$true] %s488
          %491 = dma.hbm_to_vmem [thread:$0]  %s487, 512, %s489, %s476
        $region52: #{tpu_custom_call.1} parent=27 // pred_fallthru
          _
        // Predicated region
        $region53: #{tpu_custom_call.1} parent=27 // pred_check
          %p492 = pneg %p275
        $region54: #{tpu_custom_call.1} parent=27 // pred_check_branch
          %494 = sbr.rel (%p492) target = $region56
        $region55: #{tpu_custom_call.1} parent=27 // pred_region
          %s495 = sand.u32 %s24, 1
          %s496 = scalar_lea.sflag [#allocation3], %s495
          %s497 = sand.u32 %s265, 1
          %s498 = smul.addr %s497, 256
          %s499 = scalar_lea.vmem [#allocation15], %s498
          %501 = vsyncadd %s496, 0
          %s502 = smul.addr %s32, 64
          %s503 = smul.addr %s502, 4
          %s504 = scalar_lea.hbm %s9, %s503
          %s505 = sshll.u32 %s504, 4
          %s506 = int_to_ptr.hbm [resolvable:$true] %s505
          %s507 = sshll.u32 %s499, 4
          %s508 = int_to_ptr.vmem [resolvable:$true] %s507
          %513 = dma.hbm_to_vmem [thread:$0]  %s506, 4096, %s508, %s496, 64, 64, 4
        $region56: #{tpu_custom_call.1} parent=27 // pred_fallthru
          _
      $region28: #{tpu_custom_call.1} parent=5 // pred_fallthru
        _
      %p514 = scmp.le.s32.totalorder 1, %s24
      %p515 = scmp.lt.s32.totalorder %s24, 5
      %p516 = pnand %p514, %p515
      %p517 = pneg %p516
      // Predicated region
      $region57: #{tpu_custom_call.1} parent=5 // pred_check
        _
      $region58: #{tpu_custom_call.1} parent=5 // pred_check_branch
        %519 = sbr.rel (%p516) target = $region60
      $region59: #{tpu_custom_call.1} parent=5 // pred_region
        %s520 = ssub.s32 %s24, 1
        %s521 = sand.u32 %s29, 1
        %s522 = scalar_lea.sflag [#allocation3], %s521
        %s523 = sand.u32 %s49, 1
        %s524 = smul.addr %s523, 8
        %s525 = scalar_lea.vmem [#allocation2], %s524
        // Predicated region
        $region61: #{tpu_custom_call.1} parent=59 // pred_check
          %p526 = pneg %p62
        $region62: #{tpu_custom_call.1} parent=59 // pred_check_branch
          %528 = sbr.rel (%p526) target = $region64
        $region63: #{tpu_custom_call.1} parent=59 // pred_region
          %530 = dma.done %s522, 128
        $region64: #{tpu_custom_call.1} parent=59 // pred_fallthru
          _
        // Predicated region
        $region65: #{tpu_custom_call.1} parent=59 // pred_check
          %p531 = pneg %p83
        $region66: #{tpu_custom_call.1} parent=59 // pred_check_branch
          %533 = sbr.rel (%p531) target = $region68
        $region67: #{tpu_custom_call.1} parent=59 // pred_region
          %535 = dma.done [#allocation6], 128
        $region68: #{tpu_custom_call.1} parent=59 // pred_fallthru
          _
        // Predicated region
        $region69: #{tpu_custom_call.1} parent=59 // pred_check
          %p536 = pneg %p104
        $region70: #{tpu_custom_call.1} parent=59 // pred_check_branch
          %538 = sbr.rel (%p536) target = $region72
        $region71: #{tpu_custom_call.1} parent=59 // pred_region
          %540 = dma.done [#allocation6], 2048
        $region72: #{tpu_custom_call.1} parent=59 // pred_fallthru
          _
        // Predicated region
        $region73: #{tpu_custom_call.1} parent=59 // pred_check
          %p541 = pneg %p125
        $region74: #{tpu_custom_call.1} parent=59 // pred_check_branch
          %543 = sbr.rel (%p541) target = $region76
        $region75: #{tpu_custom_call.1} parent=59 // pred_region
          %545 = dma.done [#allocation9], 128
        $region76: #{tpu_custom_call.1} parent=59 // pred_fallthru
          _
        %s546 = sand.u32 %s29, 1
        %s547 = scalar_lea.sflag [#allocation3], %s546
        %s548 = sand.u32 %s138, 1
        %s549 = smul.addr %s548, 16
        %s550 = scalar_lea.vmem [#allocation10], %s549
        // Predicated region
        $region77: #{tpu_custom_call.1} parent=59 // pred_check
          %p551 = pneg %p151
        $region78: #{tpu_custom_call.1} parent=59 // pred_check_branch
          %553 = sbr.rel (%p551) target = $region80
        $region79: #{tpu_custom_call.1} parent=59 // pred_region
          %555 = dma.done %s547, 256
        $region80: #{tpu_custom_call.1} parent=59 // pred_fallthru
          _
        %s556 = sand.u32 %s29, 1
        %s557 = scalar_lea.sflag [#allocation3], %s556
        %s558 = sand.u32 %s164, 1
        %s559 = smul.addr %s558, 192
        %s560 = scalar_lea.vmem [#allocation11], %s559
        // Predicated region
        $region81: #{tpu_custom_call.1} parent=59 // pred_check
          %p561 = pneg %p177
        $region82: #{tpu_custom_call.1} parent=59 // pred_check_branch
          %563 = sbr.rel (%p561) target = $region84
        $region83: #{tpu_custom_call.1} parent=59 // pred_region
          %565 = dma.done %s557, 3072
        $region84: #{tpu_custom_call.1} parent=59 // pred_fallthru
          _
        %s566 = sand.u32 %s29, 1
        %s567 = scalar_lea.sflag [#allocation3], %s566
        %s568 = sand.u32 %s190, 1
        %s569 = smul.addr %s568, 64
        %s570 = scalar_lea.vmem [#allocation12], %s569
        // Predicated region
        $region85: #{tpu_custom_call.1} parent=59 // pred_check
          %p571 = pneg %p203
        $region86: #{tpu_custom_call.1} parent=59 // pred_check_branch
          %573 = sbr.rel (%p571) target = $region88
        $region87: #{tpu_custom_call.1} parent=59 // pred_region
          %575 = dma.done %s567, 1024
        $region88: #{tpu_custom_call.1} parent=59 // pred_fallthru
          _
        %s576 = sand.u32 %s29, 1
        %s577 = scalar_lea.sflag [#allocation3], %s576
        %s578 = sand.u32 %s216, 1
        %s579 = smul.addr %s578, 256
        %s580 = scalar_lea.vmem [#allocation13], %s579
        // Predicated region
        $region89: #{tpu_custom_call.1} parent=59 // pred_check
          %p581 = pneg %p229
        $region90: #{tpu_custom_call.1} parent=59 // pred_check_branch
          %583 = sbr.rel (%p581) target = $region92
        $region91: #{tpu_custom_call.1} parent=59 // pred_region
          %585 = dma.done %s577, 4096
        $region92: #{tpu_custom_call.1} parent=59 // pred_fallthru
          _
        %s586 = sand.u32 %s29, 1
        %s587 = scalar_lea.sflag [#allocation3], %s586
        %s588 = sand.u32 %s242, 1
        %s589 = smul.addr %s588, 32
        %s590 = scalar_lea.vmem [#allocation14], %s589
        // Predicated region
        $region93: #{tpu_custom_call.1} parent=59 // pred_check
          %p591 = pneg %p255
        $region94: #{tpu_custom_call.1} parent=59 // pred_check_branch
          %593 = sbr.rel (%p591) target = $region96
        $region95: #{tpu_custom_call.1} parent=59 // pred_region
          %595 = dma.done %s587, 512
        $region96: #{tpu_custom_call.1} parent=59 // pred_fallthru
          _
        %s596 = sand.u32 %s29, 1
        %s597 = scalar_lea.sflag [#allocation3], %s596
        %s598 = sand.u32 %s268, 1
        %s599 = smul.addr %s598, 256
        %s600 = scalar_lea.vmem [#allocation15], %s599
        // Predicated region
        $region97: #{tpu_custom_call.1} parent=59 // pred_check
          %p601 = pneg %p281
        $region98: #{tpu_custom_call.1} parent=59 // pred_check_branch
          %603 = sbr.rel (%p601) target = $region100
        $region99: #{tpu_custom_call.1} parent=59 // pred_region
          %605 = dma.done %s597, 4096
        $region100: #{tpu_custom_call.1} parent=59 // pred_fallthru
          _
        %s606 = sand.u32 %s29, 1
        %s607 = scalar_lea.sflag [#allocation3], %s606
        %s608 = sand.u32 %s49, 1
        %s609 = smul.addr %s608, 8
        %s610 = scalar_lea.vmem [#allocation2], %s609
        %p611 = pneg %p62
        %p612 = pneg %p59
        %p613 = pneg %p83
        %p614 = pneg %p80
        %p615 = pneg %p104
        %p616 = pneg %p101
        %p617 = pneg %p125
        %p618 = pneg %p122
        %s619 = sand.u32 %s29, 1
        %s620 = scalar_lea.sflag [#allocation3], %s619
        %s621 = sand.u32 %s138, 1
        %s622 = smul.addr %s621, 16
        %s623 = scalar_lea.vmem [#allocation10], %s622
        %p624 = pneg %p151
        %p625 = pneg %p148
        %s626 = sand.u32 %s29, 1
        %s627 = scalar_lea.sflag [#allocation3], %s626
        %s628 = sand.u32 %s164, 1
        %s629 = smul.addr %s628, 192
        %s630 = scalar_lea.vmem [#allocation11], %s629
        %p631 = pneg %p177
        %p632 = pneg %p174
        %s633 = sand.u32 %s29, 1
        %s634 = scalar_lea.sflag [#allocation3], %s633
        %s635 = sand.u32 %s190, 1
        %s636 = smul.addr %s635, 64
        %s637 = scalar_lea.vmem [#allocation12], %s636
        %p638 = pneg %p203
        %p639 = pneg %p200
        %s640 = sand.u32 %s29, 1
        %s641 = scalar_lea.sflag [#allocation3], %s640
        %s642 = sand.u32 %s216, 1
        %s643 = smul.addr %s642, 256
        %s644 = scalar_lea.vmem [#allocation13], %s643
        %p645 = pneg %p229
        %p646 = pneg %p226
        %s647 = sand.u32 %s29, 1
        %s648 = scalar_lea.sflag [#allocation3], %s647
        %s649 = sand.u32 %s242, 1
        %s650 = smul.addr %s649, 32
        %s651 = scalar_lea.vmem [#allocation14], %s650
        %p652 = pneg %p255
        %p653 = pneg %p252
        %s654 = sand.u32 %s29, 1
        %s655 = scalar_lea.sflag [#allocation3], %s654
        %s656 = sand.u32 %s268, 1
        %s657 = smul.addr %s656, 256
        %s658 = scalar_lea.vmem [#allocation15], %s657
        %p659 = pneg %p281
        %p660 = pneg %p278
        %p661 = pneg %p307
        %p662 = pneg %p304
        %s663 = sand.u32 %s294, 1
        %s664 = scalar_lea.sflag [#allocation4], %s663
        %s665 = sand.u32 %s294, 1
        %s666 = smul.addr %s665, 8
        %s667 = scalar_lea.vmem [#allocation16], %s666
        %p669 = scmp.eq.s32.totalorder %s34, 0
        // Predicated region
        $region101: #{tpu_custom_call.1} parent=59 // pred_check
          %p670 = pneg %p669
        $region102: #{tpu_custom_call.1} parent=59 // pred_check_branch
          %672 = sbr.rel (%p670) target = $region104
        $region103: #{tpu_custom_call.1} parent=59 // pred_region
          %v673 = vld [vmem:[%s525] sm:$0xff]
          %v674 = vld [vmem:[#allocation7] sm:$0xf]
          %v675 = vld [vmem:[#allocation7 + $0x4] sm:$0xf]
          %v676 = vld [vmem:[#allocation7 + $0x8] sm:$0xf]
          %v677 = vld [vmem:[#allocation7 + $0xc] sm:$0xf]
          %v678 = vld [vmem:[#allocation7 + $0x10] sm:$0xf]
          %v679 = vld [vmem:[#allocation7 + $0x14] sm:$0xf]
          %v680 = vld [vmem:[#allocation7 + $0x18] sm:$0xf]
          %v681 = vld [vmem:[#allocation7 + $0x1c] sm:$0xf]
          %v682 = vld [vmem:[#allocation7 + $0x20] sm:$0xf]
          %v683 = vld [vmem:[#allocation7 + $0x24] sm:$0xf]
          %v684 = vld [vmem:[#allocation7 + $0x28] sm:$0xf]
          %v685 = vld [vmem:[#allocation7 + $0x2c] sm:$0xf]
          %v686 = vld [vmem:[#allocation7 + $0x30] sm:$0xf]
          %v687 = vld [vmem:[#allocation7 + $0x34] sm:$0xf]
          %v688 = vld [vmem:[#allocation7 + $0x38] sm:$0xf]
          %v689 = vld [vmem:[#allocation7 + $0x3c] sm:$0xf]
          %v690 = vld [vmem:[#allocation7 + $0x40] sm:$0xf]
          %v691 = vld [vmem:[#allocation7 + $0x44] sm:$0xf]
          %v692 = vld [vmem:[#allocation7 + $0x48] sm:$0xf]
          %v693 = vld [vmem:[#allocation7 + $0x4c] sm:$0xf]
          %v694 = vld [vmem:[#allocation7 + $0x50] sm:$0xf]
          %v695 = vld [vmem:[#allocation7 + $0x54] sm:$0xf]
          %v696 = vld [vmem:[#allocation7 + $0x58] sm:$0xf]
          %v697 = vld [vmem:[#allocation7 + $0x5c] sm:$0xf]
          %v698 = vld [vmem:[#allocation7 + $0x60] sm:$0xf]
          %v699 = vld [vmem:[#allocation7 + $0x64] sm:$0xf]
          %v700 = vld [vmem:[#allocation7 + $0x68] sm:$0xf]
          %v701 = vld [vmem:[#allocation7 + $0x6c] sm:$0xf]
          %v702 = vld [vmem:[#allocation7 + $0x70] sm:$0xf]
          %v703 = vld [vmem:[#allocation7 + $0x74] sm:$0xf]
          %v704 = vld [vmem:[#allocation7 + $0x78] sm:$0xf]
          %v705 = vld [vmem:[#allocation7 + $0x7c] sm:$0xf]
          %v706 = vld [vmem:[#allocation5] sm:$0xff]
          %v708 = vunpack.c.l.b16 %v673
          %v709 = vunpack.c.h.b16 %v673
          %v710 = vpack.c.b16 %v708, %v708
          %v711 = vpack.c.b16 %v709, %v709
          %v746 = vunpack.c.l.b16 %v674
          %v747 = vunpack.c.l.b16 %v675
          %v748 = vunpack.c.l.b16 %v676
          %v749 = vunpack.c.l.b16 %v677
          %v750 = vunpack.c.l.b16 %v678
          %v751 = vunpack.c.l.b16 %v679
          %v752 = vunpack.c.l.b16 %v680
          %v753 = vunpack.c.l.b16 %v681
          %v754 = vunpack.c.l.b16 %v682
          %v755 = vunpack.c.l.b16 %v683
          %v756 = vunpack.c.l.b16 %v684
          %v757 = vunpack.c.l.b16 %v685
          %v758 = vunpack.c.l.b16 %v686
          %v759 = vunpack.c.l.b16 %v687
          %v760 = vunpack.c.l.b16 %v688
          %v761 = vunpack.c.l.b16 %v689
          %v762 = vunpack.c.l.b16 %v690
          %v763 = vunpack.c.l.b16 %v691
          %v764 = vunpack.c.l.b16 %v692
          %v765 = vunpack.c.l.b16 %v693
          %v766 = vunpack.c.l.b16 %v694
          %v767 = vunpack.c.l.b16 %v695
          %v768 = vunpack.c.l.b16 %v696
          %v769 = vunpack.c.l.b16 %v697
          %v770 = vunpack.c.l.b16 %v698
          %v771 = vunpack.c.l.b16 %v699
          %v772 = vunpack.c.l.b16 %v700
          %v773 = vunpack.c.l.b16 %v701
          %v774 = vunpack.c.l.b16 %v702
          %v775 = vunpack.c.l.b16 %v703
          %v776 = vunpack.c.l.b16 %v704
          %v777 = vunpack.c.l.b16 %v705
          %v778 = vpack.c.b16 %v747, %v746
          %v779 = vpack.c.b16 %v749, %v748
          %v780 = vpack.c.b16 %v751, %v750
          %v781 = vpack.c.b16 %v753, %v752
          %v782 = vpack.c.b16 %v755, %v754
          %v783 = vpack.c.b16 %v757, %v756
          %v784 = vpack.c.b16 %v759, %v758
          %v785 = vpack.c.b16 %v761, %v760
          %v786 = vpack.c.b16 %v763, %v762
          %v787 = vpack.c.b16 %v765, %v764
          %v788 = vpack.c.b16 %v767, %v766
          %v789 = vpack.c.b16 %v769, %v768
          %v790 = vpack.c.b16 %v771, %v770
          %v791 = vpack.c.b16 %v773, %v772
          %v792 = vpack.c.b16 %v775, %v774
          %v793 = vpack.c.b16 %v777, %v776
          %810 = vmatpush.bf16.msra.mxu0 %v785
          %811 = vmatpush.bf16.msra.mxu0 %v784
          %812 = vmatpush.bf16.msra.mxu0 %v783
          %813 = vmatpush.bf16.msra.mxu0 %v782
          %814 = vmatpush.bf16.msra.mxu0 %v781
          %815 = vmatpush.bf16.msra.mxu0 %v780
          %816 = vmatpush.bf16.msra.mxu0 %v779
          %817 = vmatpush.bf16.msra.mxu0 %v778
          %818 = vmatmul.bf16.gmra.mxu0 %v710
          %v819 = vpop.f32.mrf.mxu0
          %v820 = vadd.f32 %v706, %v819
          %v821 = vpop.f32.mrf.mxu0
          %822 = vdwg.mxu0
          %823 = vmatpush.bf16.msra.mxu0 %v793
          %824 = vmatpush.bf16.msra.mxu0 %v792
          %825 = vmatpush.bf16.msra.mxu0 %v791
          %826 = vmatpush.bf16.msra.mxu0 %v790
          %827 = vmatpush.bf16.msra.mxu0 %v789
          %828 = vmatpush.bf16.msra.mxu0 %v788
          %829 = vmatpush.bf16.msra.mxu0 %v787
          %830 = vmatpush.bf16.msra.mxu0 %v786
          %831 = vmatmul.bf16.gmra.mxu0 %v711
          %v832 = vpop.f32.mrf.mxu0
          %v833 = vadd.f32 %v820, %v832
          %v834 = vpop.f32.mrf.mxu0
          %835 = vdwg.mxu0
          %v836 = vld [vmem:[#allocation8] sm:$0xff]
          %837 = vadd.xlane.f32.xlu0 %v833
          %v838 = vpop.xlane.xlu0 %837
          %v839 = vrcp.pop 128.0
          %v840 = vmul.f32 128.0, %v839
          %v841 = vsub.f32 1.0, %v840
          %v842 = vmul.f32 %v839, %v841
          %v843 = vadd.f32 %v839, %v842
          %vm844 = vweird.f32 %v839
          %v845 = vsel %vm844, %v839, %v843
          %v846 = vmul.f32 %v838, %v845
          %v847 = vmul.f32 %v833, %v833
          %848 = vadd.xlane.f32.xlu0 %v847
          %v849 = vpop.xlane.xlu0 %848
          %v850 = vmul.f32 %v849, %v845
          %v851 = vmul.f32 %v846, %v846
          %v852 = vsub.f32 %v850, %v851
          %v853 = vmax.f32 %v852, 0.0
          %v854 = vadd.f32 %v853, 1e-05
          %v855 = vrsqrt.pop %v854
          %v856 = vmul.f32 %v855, %v854
          %v857 = vmul.f32 %v856, %v855
          %v858 = vmul.f32 0.5, %v857
          %v859 = vsub.f32 1.5, %v858
          %v860 = vmul.f32 %v855, %v859
          %vm861 = vweird.f32 %v854
          %vm862 = vweird.f32 %v855
          %vm863 = vmor %vm861, %vm862
          %v864 = vsel %vm863, %v855, %v860
          %v865 = vperm.slane %v836, 0
          %v866 = vmul.f32 %v864, %v865
          %v867 = vmul.f32 %v833, %v866
          %v868 = vmul.f32 %v846, %v866
          %v869 = vperm.slane %v836, 1
          %v870 = vsub.f32 %v869, %v868
          %v871 = vadd.f32 %v867, %v870
          %872 = vst [vmem:[%s667] sm:$0xff] %v871
        $region104: #{tpu_custom_call.1} parent=59 // pred_fallthru
          _
        %v873 = vld [vmem:[%s667] sm:$0xff]
        %v874 = vld [vmem:[%s550] sm:$0xff]
        %v875 = vld [vmem:[%s550 + $0x8] sm:$0xff]
        %v876 = vlaneseq
        %v877 = vand.u32 %v876, 127
        %vm878 = vcmp.lt.s32.totalorder %v877, 5
        %v879 = vsel %vm878, 0.0, -1e+09
        %880 = vadd.xlane.f32.xlu0 %v873
        %v881 = vpop.xlane.xlu0 %880
        %v882 = vrcp.pop 128.0
        %v883 = vmul.f32 128.0, %v882
        %v884 = vsub.f32 1.0, %v883
        %v885 = vmul.f32 %v882, %v884
        %v886 = vadd.f32 %v882, %v885
        %vm887 = vweird.f32 %v882
        %v888 = vsel %vm887, %v882, %v886
        %v889 = vmul.f32 %v881, %v888
        %v890 = vmul.f32 %v873, %v873
        %891 = vadd.xlane.f32.xlu0 %v890
        %v892 = vpop.xlane.xlu0 %891
        %v893 = vmul.f32 %v892, %v888
        %v894 = vmul.f32 %v889, %v889
        %v895 = vsub.f32 %v893, %v894
        %v896 = vmax.f32 %v895, 0.0
        %v897 = vadd.f32 %v896, 1e-05
        %v898 = vrsqrt.pop %v897
        %v899 = vmul.f32 %v898, %v897
        %v900 = vmul.f32 %v899, %v898
        %v901 = vmul.f32 0.5, %v900
        %v902 = vsub.f32 1.5, %v901
        %v903 = vmul.f32 %v898, %v902
        %vm904 = vweird.f32 %v897
        %vm905 = vweird.f32 %v898
        %vm906 = vmor %vm904, %vm905
        %v907 = vsel %vm906, %v898, %v903
        %v908 = vperm.slane %v874, 0
        %v909 = vmul.f32 %v907, %v908
        %v910 = vmul.f32 %v873, %v909
        %v911 = vmul.f32 %v889, %v909
        %v912 = vperm.slane %v874, 1
        %v913 = vsub.f32 %v912, %v911
        %v914 = vadd.f32 %v910, %v913
        %v915 = vld [vmem:[%s560] sm:$0xff]
        %v916 = vld [vmem:[%s560 + $0x8] sm:$0xf]
        %v917 = vld [vmem:[%s560 + $0xc] sm:$0xff]
        %v918 = vld [vmem:[%s560 + $0x14] sm:$0xf]
        %v919 = vld [vmem:[%s560 + $0x18] sm:$0xff]
        %v920 = vld [vmem:[%s560 + $0x20] sm:$0xf]
        %v921 = vld [vmem:[%s560 + $0x24] sm:$0xff]
        %v922 = vld [vmem:[%s560 + $0x2c] sm:$0xf]
        %v923 = vld [vmem:[%s560 + $0x30] sm:$0xff]
        %v924 = vld [vmem:[%s560 + $0x38] sm:$0xf]
        %v925 = vld [vmem:[%s560 + $0x3c] sm:$0xff]
        %v926 = vld [vmem:[%s560 + $0x44] sm:$0xf]
        %v927 = vld [vmem:[%s560 + $0x48] sm:$0xff]
        %v928 = vld [vmem:[%s560 + $0x50] sm:$0xf]
        %v929 = vld [vmem:[%s560 + $0x54] sm:$0xff]
        %v930 = vld [vmem:[%s560 + $0x5c] sm:$0xf]
        %v931 = vld [vmem:[%s560 + $0x60] sm:$0xff]
        %v932 = vld [vmem:[%s560 + $0x68] sm:$0xf]
        %v933 = vld [vmem:[%s560 + $0x6c] sm:$0xff]
        %v934 = vld [vmem:[%s560 + $0x74] sm:$0xf]
        %v935 = vld [vmem:[%s560 + $0x78] sm:$0xff]
        %v936 = vld [vmem:[%s560 + $0x80] sm:$0xf]
        %v937 = vld [vmem:[%s560 + $0x84] sm:$0xff]
        %v938 = vld [vmem:[%s560 + $0x8c] sm:$0xf]
        %v939 = vld [vmem:[%s560 + $0x90] sm:$0xff]
        %v940 = vld [vmem:[%s560 + $0x98] sm:$0xf]
        %v941 = vld [vmem:[%s560 + $0x9c] sm:$0xff]
        %v942 = vld [vmem:[%s560 + $0xa4] sm:$0xf]
        %v943 = vld [vmem:[%s560 + $0xa8] sm:$0xff]
        %v944 = vld [vmem:[%s560 + $0xb0] sm:$0xf]
        %v945 = vld [vmem:[%s560 + $0xb4] sm:$0xff]
        %v946 = vld [vmem:[%s560 + $0xbc] sm:$0xf]
        %v947 = vpack.c.bf16 %v914, %v914
        %v980 = vunpack.c.l.b16 %v915
        %v981 = vunpack.c.h.b16 %v915
        %v982 = vunpack.c.l.b16 %v916
        %v983 = vunpack.c.l.b16 %v917
        %v984 = vunpack.c.h.b16 %v917
        %v985 = vunpack.c.l.b16 %v918
        %v986 = vunpack.c.l.b16 %v919
        %v987 = vunpack.c.h.b16 %v919
        %v988 = vunpack.c.l.b16 %v920
        %v989 = vunpack.c.l.b16 %v921
        %v990 = vunpack.c.h.b16 %v921
        %v991 = vunpack.c.l.b16 %v922
        %v992 = vunpack.c.l.b16 %v923
        %v993 = vunpack.c.h.b16 %v923
        %v994 = vunpack.c.l.b16 %v924
        %v995 = vunpack.c.l.b16 %v925
        %v996 = vunpack.c.h.b16 %v925
        %v997 = vunpack.c.l.b16 %v926
        %v998 = vunpack.c.l.b16 %v927
        %v999 = vunpack.c.h.b16 %v927
        %v1000 = vunpack.c.l.b16 %v928
        %v1001 = vunpack.c.l.b16 %v929
        %v1002 = vunpack.c.h.b16 %v929
        %v1003 = vunpack.c.l.b16 %v930
        %v1004 = vunpack.c.l.b16 %v931
        %v1005 = vunpack.c.h.b16 %v931
        %v1006 = vunpack.c.l.b16 %v932
        %v1007 = vunpack.c.l.b16 %v933
        %v1008 = vunpack.c.h.b16 %v933
        %v1009 = vunpack.c.l.b16 %v934
        %v1010 = vunpack.c.l.b16 %v935
        %v1011 = vunpack.c.h.b16 %v935
        %v1012 = vunpack.c.l.b16 %v936
        %v1013 = vunpack.c.l.b16 %v937
        %v1014 = vunpack.c.h.b16 %v937
        %v1015 = vunpack.c.l.b16 %v938
        %v1016 = vunpack.c.l.b16 %v939
        %v1017 = vunpack.c.h.b16 %v939
        %v1018 = vunpack.c.l.b16 %v940
        %v1019 = vunpack.c.l.b16 %v941
        %v1020 = vunpack.c.h.b16 %v941
        %v1021 = vunpack.c.l.b16 %v942
        %v1022 = vunpack.c.l.b16 %v943
        %v1023 = vunpack.c.h.b16 %v943
        %v1024 = vunpack.c.l.b16 %v944
        %v1025 = vunpack.c.l.b16 %v945
        %v1026 = vunpack.c.h.b16 %v945
        %v1027 = vunpack.c.l.b16 %v946
        %v1028 = vpack.c.b16 %v983, %v980
        %v1029 = vpack.c.b16 %v984, %v981
        %v1030 = vpack.c.b16 %v985, %v982
        %v1031 = vpack.c.b16 %v989, %v986
        %v1032 = vpack.c.b16 %v990, %v987
        %v1033 = vpack.c.b16 %v991, %v988
        %v1034 = vpack.c.b16 %v995, %v992
        %v1035 = vpack.c.b16 %v996, %v993
        %v1036 = vpack.c.b16 %v997, %v994
        %v1037 = vpack.c.b16 %v1001, %v998
        %v1038 = vpack.c.b16 %v1002, %v999
        %v1039 = vpack.c.b16 %v1003, %v1000
        %v1040 = vpack.c.b16 %v1007, %v1004
        %v1041 = vpack.c.b16 %v1008, %v1005
        %v1042 = vpack.c.b16 %v1009, %v1006
        %v1043 = vpack.c.b16 %v1013, %v1010
        %v1044 = vpack.c.b16 %v1014, %v1011
        %v1045 = vpack.c.b16 %v1015, %v1012
        %v1046 = vpack.c.b16 %v1019, %v1016
        %v1047 = vpack.c.b16 %v1020, %v1017
        %v1048 = vpack.c.b16 %v1021, %v1018
        %v1049 = vpack.c.b16 %v1025, %v1022
        %v1050 = vpack.c.b16 %v1026, %v1023
        %v1051 = vpack.c.b16 %v1027, %v1024
        %1076 = vmatpush.bf16.msra.mxu0 %v1049
        %1077 = vmatpush.bf16.msra.mxu0 %v1046
        %1078 = vmatpush.bf16.msra.mxu0 %v1043
        %1079 = vmatpush.bf16.msra.mxu0 %v1040
        %1080 = vmatpush.bf16.msra.mxu0 %v1037
        %1081 = vmatpush.bf16.msra.mxu0 %v1034
        %1082 = vmatpush.bf16.msra.mxu0 %v1031
        %1083 = vmatpush.bf16.msra.mxu0 %v1028
        %1084 = vmatmul.bf16.gmra.mxu0 %v947
        %v1085 = vpop.f32.mrf.mxu0
        %v1086 = vadd.f32 0.0, %v1085
        %v1087 = vpop.f32.mrf.mxu0
        %1088 = vdwg.mxu0
        %1089 = vmatpush.bf16.msra.mxu0 %v1050
        %1090 = vmatpush.bf16.msra.mxu0 %v1047
        %1091 = vmatpush.bf16.msra.mxu0 %v1044
        %1092 = vmatpush.bf16.msra.mxu0 %v1041
        %1093 = vmatpush.bf16.msra.mxu0 %v1038
        %1094 = vmatpush.bf16.msra.mxu0 %v1035
        %1095 = vmatpush.bf16.msra.mxu0 %v1032
        %1096 = vmatpush.bf16.msra.mxu0 %v1029
        %1097 = vmatmul.bf16.gmra.mxu0 %v947
        %v1098 = vpop.f32.mrf.mxu0
        %v1099 = vadd.f32 0.0, %v1098
        %v1100 = vpop.f32.mrf.mxu0
        %1101 = vdwg.mxu0
        %1102 = vmatpush.bf16.msra.mxu0 %v1051
        %1103 = vmatpush.bf16.msra.mxu0 %v1048
        %1104 = vmatpush.bf16.msra.mxu0 %v1045
        %1105 = vmatpush.bf16.msra.mxu0 %v1042
        %1106 = vmatpush.bf16.msra.mxu0 %v1039
        %1107 = vmatpush.bf16.msra.mxu0 %v1036
        %1108 = vmatpush.bf16.msra.mxu0 %v1033
        %1109 = vmatpush.bf16.msra.mxu0 %v1030
        %1110 = vmatmul.bf16.gmra.mxu0 %v947
        %v1111 = vpop.f32.mrf.mxu0
        %v1112 = vadd.f32 0.0, %v1111
        %v1113 = vpop.f32.mrf.mxu0
        %1114 = vdwg.mxu0
        %v1115 = vperm.slane %v874, 2
        %v1116 = vadd.f32 %v1086, %v1115
        %v1117 = vperm.slane %v874, 3
        %v1118 = vadd.f32 %v1099, %v1117
        %v1119 = vperm.slane %v874, 4
        %v1120 = vadd.f32 %v1112, %v1119
        %v1121 = vpack.c.bf16 %v1116, %v1116
        %v1122 = vpack.c.bf16 %v1118, %v1118
        %vm1123 = vcmask 261120
        %v1125 = vsel %vm1123, %v1121, 0
        %v1128 = vsel %vm1123, %v1122, 0
        %1130 = vmatpush.bf16.xpose.msra.mxu0 0
        %1131 = vmatpush.bf16.xpose.msra.mxu0 0
        %1132 = vmatpush.bf16.xpose.msra.mxu0 0
        %1133 = vmatpush.bf16.xpose.msra.mxu0 0
        %1134 = vmatpush.bf16.xpose.msra.mxu0 0
        %1135 = vmatpush.bf16.xpose.msra.mxu0 0
        %1136 = vmatpush.bf16.xpose.msra.mxu0 0
        %1137 = vmatpush.bf16.xpose.msra.mxu0 %v1128
        %1138 = vmatmul.bf16.gmra.mxu0 %v1125
        %v1139 = vpop.f32.mrf.mxu0
        %v1140 = vadd.f32 0.0, %v1139
        %v1141 = vpop.f32.mrf.mxu0
        %1142 = vdwg.mxu0
        %v1143 = vmul.f32 %v1140, 0.17677669
        %v1144 = vadd.f32 %v1143, %v879
        %vm1145 = vcmask 64512
        %v1146 = vsel %vm1145, %v1144, -inf
        %1147 = vmax.xlane.f32.xlu0 %v1146
        %v1148 = vpop.xlane.xlu0 %1147
        %v1149 = vsub.f32 %v1144, %v1148
        %v1150 = vmul.f32 %v1149, 1.442695
        %v1151 = vpow.pop %v1150
        %v1152 = vsel %vm1145, %v1151, 0.0
        %1153 = vadd.xlane.f32.xlu0 %v1152
        %v1154 = vpop.xlane.xlu0 %1153
        %v1155 = vrcp.pop %v1154
        %v1156 = vmul.f32 %v1151, %v1155
        %v1157 = vpack.c.bf16 %v1156, %v1156
        %v1158 = vpack.c.bf16 %v1120, %v1120
        %v1160 = vsel %vm1145, %v1157, 0
        %vm1162 = vcmask 1043456
        %v1164 = vsel %vm1162, %v1158, 0
        %1166 = vmatpush.bf16.msra.mxu0 0
        %1167 = vmatpush.bf16.msra.mxu0 0
        %1168 = vmatpush.bf16.msra.mxu0 0
        %1169 = vmatpush.bf16.msra.mxu0 0
        %1170 = vmatpush.bf16.msra.mxu0 0
        %1171 = vmatpush.bf16.msra.mxu0 0
        %1172 = vmatpush.bf16.msra.mxu0 0
        %1173 = vmatpush.bf16.msra.mxu0 %v1164
        %1174 = vmatmul.bf16.gmra.mxu0 %v1160
        %v1175 = vpop.f32.mrf.mxu0
        %v1176 = vadd.f32 0.0, %v1175
        %v1177 = vpop.f32.mrf.mxu0
        %1178 = vdwg.mxu0
        %1180 = vrot.lane.b32.xlu0 %v1121, 96
        %v1181 = vpop.permute.xlu0 %1180
        %1183 = vrot.lane.b32.xlu0 %v1122, 96
        %v1184 = vpop.permute.xlu0 %1183
        %v1186 = vsel %vm1123, %v1181, 0
        %v1189 = vsel %vm1123, %v1184, 0
        %1191 = vmatpush.bf16.xpose.msra.mxu0 0
        %1192 = vmatpush.bf16.xpose.msra.mxu0 0
        %1193 = vmatpush.bf16.xpose.msra.mxu0 0
        %1194 = vmatpush.bf16.xpose.msra.mxu0 0
        %1195 = vmatpush.bf16.xpose.msra.mxu0 0
        %1196 = vmatpush.bf16.xpose.msra.mxu0 0
        %1197 = vmatpush.bf16.xpose.msra.mxu0 0
        %1198 = vmatpush.bf16.xpose.msra.mxu0 %v1189
        %1199 = vmatmul.bf16.gmra.mxu0 %v1186
        %v1200 = vpop.f32.mrf.mxu0
        %v1201 = vadd.f32 0.0, %v1200
        %v1202 = vpop.f32.mrf.mxu0
        %1203 = vdwg.mxu0
        %v1204 = vmul.f32 %v1201, 0.17677669
        %v1205 = vadd.f32 %v1204, %v879
        %v1206 = vsel %vm1145, %v1205, -inf
        %1207 = vmax.xlane.f32.xlu0 %v1206
        %v1208 = vpop.xlane.xlu0 %1207
        %v1209 = vsub.f32 %v1205, %v1208
        %v1210 = vmul.f32 %v1209, 1.442695
        %v1211 = vpow.pop %v1210
        %v1212 = vsel %vm1145, %v1211, 0.0
        %1213 = vadd.xlane.f32.xlu0 %v1212
        %v1214 = vpop.xlane.xlu0 %1213
        %v1215 = vrcp.pop %v1214
        %v1216 = vmul.f32 %v1211, %v1215
        %v1217 = vpack.c.bf16 %v1216, %v1216
        %1219 = vrot.lane.b32.xlu0 %v1158, 96
        %v1220 = vpop.permute.xlu0 %1219
        %v1222 = vsel %vm1145, %v1217, 0
        %v1225 = vsel %vm1162, %v1220, 0
        %1227 = vmatpush.bf16.msra.mxu0 0
        %1228 = vmatpush.bf16.msra.mxu0 0
        %1229 = vmatpush.bf16.msra.mxu0 0
        %1230 = vmatpush.bf16.msra.mxu0 0
        %1231 = vmatpush.bf16.msra.mxu0 0
        %1232 = vmatpush.bf16.msra.mxu0 0
        %1233 = vmatpush.bf16.msra.mxu0 0
        %1234 = vmatpush.bf16.msra.mxu0 %v1225
        %1235 = vmatmul.bf16.gmra.mxu0 %v1222
        %v1236 = vpop.f32.mrf.mxu0
        %v1237 = vadd.f32 0.0, %v1236
        %v1238 = vpop.f32.mrf.mxu0
        %1239 = vdwg.mxu0
        %1240 = vrot.lane.b32.xlu0 %v1121, 64
        %v1241 = vpop.permute.xlu0 %1240
        %1242 = vrot.lane.b32.xlu0 %v1122, 64
        %v1243 = vpop.permute.xlu0 %1242
        %v1245 = vsel %vm1123, %v1241, 0
        %v1248 = vsel %vm1123, %v1243, 0
        %1250 = vmatpush.bf16.xpose.msra.mxu0 0
        %1251 = vmatpush.bf16.xpose.msra.mxu0 0
        %1252 = vmatpush.bf16.xpose.msra.mxu0 0
        %1253 = vmatpush.bf16.xpose.msra.mxu0 0
        %1254 = vmatpush.bf16.xpose.msra.mxu0 0
        %1255 = vmatpush.bf16.xpose.msra.mxu0 0
        %1256 = vmatpush.bf16.xpose.msra.mxu0 0
        %1257 = vmatpush.bf16.xpose.msra.mxu0 %v1248
        %1258 = vmatmul.bf16.gmra.mxu0 %v1245
        %v1259 = vpop.f32.mrf.mxu0
        %v1260 = vadd.f32 0.0, %v1259
        %v1261 = vpop.f32.mrf.mxu0
        %1262 = vdwg.mxu0
        %v1263 = vmul.f32 %v1260, 0.17677669
        %v1264 = vadd.f32 %v1263, %v879
        %v1265 = vsel %vm1145, %v1264, -inf
        %1266 = vmax.xlane.f32.xlu0 %v1265
        %v1267 = vpop.xlane.xlu0 %1266
        %v1268 = vsub.f32 %v1264, %v1267
        %v1269 = vmul.f32 %v1268, 1.442695
        %v1270 = vpow.pop %v1269
        %v1271 = vsel %vm1145, %v1270, 0.0
        %1272 = vadd.xlane.f32.xlu0 %v1271
        %v1273 = vpop.xlane.xlu0 %1272
        %v1274 = vrcp.pop %v1273
        %v1275 = vmul.f32 %v1270, %v1274
        %v1276 = vpack.c.bf16 %v1275, %v1275
        %1277 = vrot.lane.b32.xlu0 %v1158, 64
        %v1278 = vpop.permute.xlu0 %1277
        %v1280 = vsel %vm1145, %v1276, 0
        %v1283 = vsel %vm1162, %v1278, 0
        %1285 = vmatpush.bf16.msra.mxu0 0
        %1286 = vmatpush.bf16.msra.mxu0 0
        %1287 = vmatpush.bf16.msra.mxu0 0
        %1288 = vmatpush.bf16.msra.mxu0 0
        %1289 = vmatpush.bf16.msra.mxu0 0
        %1290 = vmatpush.bf16.msra.mxu0 0
        %1291 = vmatpush.bf16.msra.mxu0 0
        %1292 = vmatpush.bf16.msra.mxu0 %v1283
        %1293 = vmatmul.bf16.gmra.mxu0 %v1280
        %v1294 = vpop.f32.mrf.mxu0
        %v1295 = vadd.f32 0.0, %v1294
        %v1296 = vpop.f32.mrf.mxu0
        %1297 = vdwg.mxu0
        %1298 = vrot.lane.b32.xlu0 %v1121, 32
        %v1299 = vpop.permute.xlu0 %1298
        %1300 = vrot.lane.b32.xlu0 %v1122, 32
        %v1301 = vpop.permute.xlu0 %1300
        %v1303 = vsel %vm1123, %v1299, 0
        %v1306 = vsel %vm1123, %v1301, 0
        %1308 = vmatpush.bf16.xpose.msra.mxu0 0
        %1309 = vmatpush.bf16.xpose.msra.mxu0 0
        %1310 = vmatpush.bf16.xpose.msra.mxu0 0
        %1311 = vmatpush.bf16.xpose.msra.mxu0 0
        %1312 = vmatpush.bf16.xpose.msra.mxu0 0
        %1313 = vmatpush.bf16.xpose.msra.mxu0 0
        %1314 = vmatpush.bf16.xpose.msra.mxu0 0
        %1315 = vmatpush.bf16.xpose.msra.mxu0 %v1306
        %1316 = vmatmul.bf16.gmra.mxu0 %v1303
        %v1317 = vpop.f32.mrf.mxu0
        %v1318 = vadd.f32 0.0, %v1317
        %v1319 = vpop.f32.mrf.mxu0
        %1320 = vdwg.mxu0
        %v1321 = vmul.f32 %v1318, 0.17677669
        %v1322 = vadd.f32 %v1321, %v879
        %v1323 = vsel %vm1145, %v1322, -inf
        %1324 = vmax.xlane.f32.xlu0 %v1323
        %v1325 = vpop.xlane.xlu0 %1324
        %v1326 = vsub.f32 %v1322, %v1325
        %v1327 = vmul.f32 %v1326, 1.442695
        %v1328 = vpow.pop %v1327
        %v1329 = vsel %vm1145, %v1328, 0.0
        %1330 = vadd.xlane.f32.xlu0 %v1329
        %v1331 = vpop.xlane.xlu0 %1330
        %v1332 = vrcp.pop %v1331
        %v1333 = vmul.f32 %v1328, %v1332
        %v1334 = vpack.c.bf16 %v1333, %v1333
        %1335 = vrot.lane.b32.xlu0 %v1158, 32
        %v1336 = vpop.permute.xlu0 %1335
        %v1338 = vsel %vm1145, %v1334, 0
        %v1341 = vsel %vm1162, %v1336, 0
        %1343 = vmatpush.bf16.msra.mxu0 0
        %1344 = vmatpush.bf16.msra.mxu0 0
        %1345 = vmatpush.bf16.msra.mxu0 0
        %1346 = vmatpush.bf16.msra.mxu0 0
        %1347 = vmatpush.bf16.msra.mxu0 0
        %1348 = vmatpush.bf16.msra.mxu0 0
        %1349 = vmatpush.bf16.msra.mxu0 0
        %1350 = vmatpush.bf16.msra.mxu0 %v1341
        %1351 = vmatmul.bf16.gmra.mxu0 %v1338
        %v1352 = vpop.f32.mrf.mxu0
        %v1353 = vadd.f32 0.0, %v1352
        %v1354 = vpop.f32.mrf.mxu0
        %1355 = vdwg.mxu0
        %1357 = vrot.lane.b32.xlu0 %v1237, 32
        %v1358 = vpop.permute.xlu0 %1357
        %1361 = vrot.lane.b32.xlu0 %v1295, 64
        %v1362 = vpop.permute.xlu0 %1361
        %1365 = vrot.lane.b32.xlu0 %v1353, 96
        %v1366 = vpop.permute.xlu0 %1365
        %v1368 = vsel %vm1123, %v1176, %v1358
        %vm1369 = vcmask 523264
        %v1370 = vsel %vm1369, %v1368, %v1362
        %vm1371 = vcmask 785408
        %v1372 = vsel %vm1371, %v1370, %v1366
        %v1373 = vld [vmem:[%s570] sm:$0xf]
        %v1374 = vld [vmem:[%s570 + $0x4] sm:$0xf]
        %v1375 = vld [vmem:[%s570 + $0x8] sm:$0xf]
        %v1376 = vld [vmem:[%s570 + $0xc] sm:$0xf]
        %v1377 = vld [vmem:[%s570 + $0x10] sm:$0xf]
        %v1378 = vld [vmem:[%s570 + $0x14] sm:$0xf]
        %v1379 = vld [vmem:[%s570 + $0x18] sm:$0xf]
        %v1380 = vld [vmem:[%s570 + $0x1c] sm:$0xf]
        %v1381 = vld [vmem:[%s570 + $0x20] sm:$0xf]
        %v1382 = vld [vmem:[%s570 + $0x24] sm:$0xf]
        %v1383 = vld [vmem:[%s570 + $0x28] sm:$0xf]
        %v1384 = vld [vmem:[%s570 + $0x2c] sm:$0xf]
        %v1385 = vld [vmem:[%s570 + $0x30] sm:$0xf]
        %v1386 = vld [vmem:[%s570 + $0x34] sm:$0xf]
        %v1387 = vld [vmem:[%s570 + $0x38] sm:$0xf]
        %v1388 = vld [vmem:[%s570 + $0x3c] sm:$0xf]
        %v1389 = vpack.c.bf16 %v1372, %v1372
        %v1406 = vunpack.c.l.b16 %v1373
        %v1407 = vunpack.c.l.b16 %v1374
        %v1408 = vunpack.c.l.b16 %v1375
        %v1409 = vunpack.c.l.b16 %v1376
        %v1410 = vunpack.c.l.b16 %v1377
        %v1411 = vunpack.c.l.b16 %v1378
        %v1412 = vunpack.c.l.b16 %v1379
        %v1413 = vunpack.c.l.b16 %v1380
        %v1414 = vunpack.c.l.b16 %v1381
        %v1415 = vunpack.c.l.b16 %v1382
        %v1416 = vunpack.c.l.b16 %v1383
        %v1417 = vunpack.c.l.b16 %v1384
        %v1418 = vunpack.c.l.b16 %v1385
        %v1419 = vunpack.c.l.b16 %v1386
        %v1420 = vunpack.c.l.b16 %v1387
        %v1421 = vunpack.c.l.b16 %v1388
        %v1422 = vpack.c.b16 %v1407, %v1406
        %v1423 = vpack.c.b16 %v1409, %v1408
        %v1424 = vpack.c.b16 %v1411, %v1410
        %v1425 = vpack.c.b16 %v1413, %v1412
        %v1426 = vpack.c.b16 %v1415, %v1414
        %v1427 = vpack.c.b16 %v1417, %v1416
        %v1428 = vpack.c.b16 %v1419, %v1418
        %v1429 = vpack.c.b16 %v1421, %v1420
        %1438 = vmatpush.bf16.msra.mxu0 %v1429
        %1439 = vmatpush.bf16.msra.mxu0 %v1428
        %1440 = vmatpush.bf16.msra.mxu0 %v1427
        %1441 = vmatpush.bf16.msra.mxu0 %v1426
        %1442 = vmatpush.bf16.msra.mxu0 %v1425
        %1443 = vmatpush.bf16.msra.mxu0 %v1424
        %1444 = vmatpush.bf16.msra.mxu0 %v1423
        %1445 = vmatpush.bf16.msra.mxu0 %v1422
        %1446 = vmatmul.bf16.gmra.mxu0 %v1389
        %v1447 = vpop.f32.mrf.mxu0
        %v1448 = vadd.f32 0.0, %v1447
        %v1449 = vpop.f32.mrf.mxu0
        %1450 = vdwg.mxu0
        %v1451 = vadd.f32 %v873, %v1448
        %v1452 = vperm.slane %v874, 5
        %v1453 = vadd.f32 %v1451, %v1452
        %1454 = vadd.xlane.f32.xlu0 %v1453
        %v1455 = vpop.xlane.xlu0 %1454
        %v1456 = vmul.f32 %v1455, %v888
        %v1457 = vmul.f32 %v1453, %v1453
        %1458 = vadd.xlane.f32.xlu0 %v1457
        %v1459 = vpop.xlane.xlu0 %1458
        %v1460 = vmul.f32 %v1459, %v888
        %v1461 = vmul.f32 %v1456, %v1456
        %v1462 = vsub.f32 %v1460, %v1461
        %v1463 = vmax.f32 %v1462, 0.0
        %v1464 = vadd.f32 %v1463, 1e-05
        %v1465 = vrsqrt.pop %v1464
        %v1466 = vmul.f32 %v1465, %v1464
        %v1467 = vmul.f32 %v1466, %v1465
        %v1468 = vmul.f32 0.5, %v1467
        %v1469 = vsub.f32 1.5, %v1468
        %v1470 = vmul.f32 %v1465, %v1469
        %vm1471 = vweird.f32 %v1464
        %vm1472 = vweird.f32 %v1465
        %vm1473 = vmor %vm1471, %vm1472
        %v1474 = vsel %vm1473, %v1465, %v1470
        %v1475 = vperm.slane %v874, 6
        %v1476 = vmul.f32 %v1474, %v1475
        %v1477 = vmul.f32 %v1453, %v1476
        %v1478 = vmul.f32 %v1456, %v1476
        %v1479 = vperm.slane %v874, 7
        %v1480 = vsub.f32 %v1479, %v1478
        %v1481 = vadd.f32 %v1477, %v1480
        %v1482 = vld [vmem:[%s580] sm:$0xff]
        %v1483 = vld [vmem:[%s580 + $0x8] sm:$0xff]
        %v1484 = vld [vmem:[%s580 + $0x10] sm:$0xff]
        %v1485 = vld [vmem:[%s580 + $0x18] sm:$0xff]
        %v1486 = vld [vmem:[%s580 + $0x20] sm:$0xff]
        %v1487 = vld [vmem:[%s580 + $0x28] sm:$0xff]
        %v1488 = vld [vmem:[%s580 + $0x30] sm:$0xff]
        %v1489 = vld [vmem:[%s580 + $0x38] sm:$0xff]
        %v1490 = vld [vmem:[%s580 + $0x40] sm:$0xff]
        %v1491 = vld [vmem:[%s580 + $0x48] sm:$0xff]
        %v1492 = vld [vmem:[%s580 + $0x50] sm:$0xff]
        %v1493 = vld [vmem:[%s580 + $0x58] sm:$0xff]
        %v1494 = vld [vmem:[%s580 + $0x60] sm:$0xff]
        %v1495 = vld [vmem:[%s580 + $0x68] sm:$0xff]
        %v1496 = vld [vmem:[%s580 + $0x70] sm:$0xff]
        %v1497 = vld [vmem:[%s580 + $0x78] sm:$0xff]
        %v1498 = vld [vmem:[%s580 + $0x80] sm:$0xff]
        %v1499 = vld [vmem:[%s580 + $0x88] sm:$0xff]
        %v1500 = vld [vmem:[%s580 + $0x90] sm:$0xff]
        %v1501 = vld [vmem:[%s580 + $0x98] sm:$0xff]
        %v1502 = vld [vmem:[%s580 + $0xa0] sm:$0xff]
        %v1503 = vld [vmem:[%s580 + $0xa8] sm:$0xff]
        %v1504 = vld [vmem:[%s580 + $0xb0] sm:$0xff]
        %v1505 = vld [vmem:[%s580 + $0xb8] sm:$0xff]
        %v1506 = vld [vmem:[%s580 + $0xc0] sm:$0xff]
        %v1507 = vld [vmem:[%s580 + $0xc8] sm:$0xff]
        %v1508 = vld [vmem:[%s580 + $0xd0] sm:$0xff]
        %v1509 = vld [vmem:[%s580 + $0xd8] sm:$0xff]
        %v1510 = vld [vmem:[%s580 + $0xe0] sm:$0xff]
        %v1511 = vld [vmem:[%s580 + $0xe8] sm:$0xff]
        %v1512 = vld [vmem:[%s580 + $0xf0] sm:$0xff]
        %v1513 = vld [vmem:[%s580 + $0xf8] sm:$0xff]
        %v1514 = vpack.c.bf16 %v1481, %v1481
        %v1515 = vld [vmem:[%s590] sm:$0xff]
        %v1516 = vld [vmem:[%s590 + $0x8] sm:$0xff]
        %v1517 = vld [vmem:[%s590 + $0x10] sm:$0xff]
        %v1518 = vld [vmem:[%s590 + $0x18] sm:$0xff]
        %v1519 = vperm.slane %v1515, 0
        %v1520 = vperm.slane %v1516, 0
        %v1521 = vperm.slane %v1517, 0
        %v1522 = vperm.slane %v1518, 0
        %v1555 = vunpack.c.l.b16 %v1482
        %v1556 = vunpack.c.h.b16 %v1482
        %v1557 = vunpack.c.l.b16 %v1483
        %v1558 = vunpack.c.h.b16 %v1483
        %v1559 = vunpack.c.l.b16 %v1484
        %v1560 = vunpack.c.h.b16 %v1484
        %v1561 = vunpack.c.l.b16 %v1485
        %v1562 = vunpack.c.h.b16 %v1485
        %v1563 = vunpack.c.l.b16 %v1486
        %v1564 = vunpack.c.h.b16 %v1486
        %v1565 = vunpack.c.l.b16 %v1487
        %v1566 = vunpack.c.h.b16 %v1487
        %v1567 = vunpack.c.l.b16 %v1488
        %v1568 = vunpack.c.h.b16 %v1488
        %v1569 = vunpack.c.l.b16 %v1489
        %v1570 = vunpack.c.h.b16 %v1489
        %v1571 = vunpack.c.l.b16 %v1490
        %v1572 = vunpack.c.h.b16 %v1490
        %v1573 = vunpack.c.l.b16 %v1491
        %v1574 = vunpack.c.h.b16 %v1491
        %v1575 = vunpack.c.l.b16 %v1492
        %v1576 = vunpack.c.h.b16 %v1492
        %v1577 = vunpack.c.l.b16 %v1493
        %v1578 = vunpack.c.h.b16 %v1493
        %v1579 = vunpack.c.l.b16 %v1494
        %v1580 = vunpack.c.h.b16 %v1494
        %v1581 = vunpack.c.l.b16 %v1495
        %v1582 = vunpack.c.h.b16 %v1495
        %v1583 = vunpack.c.l.b16 %v1496
        %v1584 = vunpack.c.h.b16 %v1496
        %v1585 = vunpack.c.l.b16 %v1497
        %v1586 = vunpack.c.h.b16 %v1497
        %v1587 = vunpack.c.l.b16 %v1498
        %v1588 = vunpack.c.h.b16 %v1498
        %v1589 = vunpack.c.l.b16 %v1499
        %v1590 = vunpack.c.h.b16 %v1499
        %v1591 = vunpack.c.l.b16 %v1500
        %v1592 = vunpack.c.h.b16 %v1500
        %v1593 = vunpack.c.l.b16 %v1501
        %v1594 = vunpack.c.h.b16 %v1501
        %v1595 = vunpack.c.l.b16 %v1502
        %v1596 = vunpack.c.h.b16 %v1502
        %v1597 = vunpack.c.l.b16 %v1503
        %v1598 = vunpack.c.h.b16 %v1503
        %v1599 = vunpack.c.l.b16 %v1504
        %v1600 = vunpack.c.h.b16 %v1504
        %v1601 = vunpack.c.l.b16 %v1505
        %v1602 = vunpack.c.h.b16 %v1505
        %v1603 = vunpack.c.l.b16 %v1506
        %v1604 = vunpack.c.h.b16 %v1506
        %v1605 = vunpack.c.l.b16 %v1507
        %v1606 = vunpack.c.h.b16 %v1507
        %v1607 = vunpack.c.l.b16 %v1508
        %v1608 = vunpack.c.h.b16 %v1508
        %v1609 = vunpack.c.l.b16 %v1509
        %v1610 = vunpack.c.h.b16 %v1509
        %v1611 = vunpack.c.l.b16 %v1510
        %v1612 = vunpack.c.h.b16 %v1510
        %v1613 = vunpack.c.l.b16 %v1511
        %v1614 = vunpack.c.h.b16 %v1511
        %v1615 = vunpack.c.l.b16 %v1512
        %v1616 = vunpack.c.h.b16 %v1512
        %v1617 = vunpack.c.l.b16 %v1513
        %v1618 = vunpack.c.h.b16 %v1513
        %v1619 = vpack.c.b16 %v1559, %v1555
        %v1620 = vpack.c.b16 %v1560, %v1556
        %v1621 = vpack.c.b16 %v1561, %v1557
        %v1622 = vpack.c.b16 %v1562, %v1558
        %v1623 = vpack.c.b16 %v1567, %v1563
        %v1624 = vpack.c.b16 %v1568, %v1564
        %v1625 = vpack.c.b16 %v1569, %v1565
        %v1626 = vpack.c.b16 %v1570, %v1566
        %v1627 = vpack.c.b16 %v1575, %v1571
        %v1628 = vpack.c.b16 %v1576, %v1572
        %v1629 = vpack.c.b16 %v1577, %v1573
        %v1630 = vpack.c.b16 %v1578, %v1574
        %v1631 = vpack.c.b16 %v1583, %v1579
        %v1632 = vpack.c.b16 %v1584, %v1580
        %v1633 = vpack.c.b16 %v1585, %v1581
        %v1634 = vpack.c.b16 %v1586, %v1582
        %v1635 = vpack.c.b16 %v1591, %v1587
        %v1636 = vpack.c.b16 %v1592, %v1588
        %v1637 = vpack.c.b16 %v1593, %v1589
        %v1638 = vpack.c.b16 %v1594, %v1590
        %v1639 = vpack.c.b16 %v1599, %v1595
        %v1640 = vpack.c.b16 %v1600, %v1596
        %v1641 = vpack.c.b16 %v1601, %v1597
        %v1642 = vpack.c.b16 %v1602, %v1598
        %v1643 = vpack.c.b16 %v1607, %v1603
        %v1644 = vpack.c.b16 %v1608, %v1604
        %v1645 = vpack.c.b16 %v1609, %v1605
        %v1646 = vpack.c.b16 %v1610, %v1606
        %v1647 = vpack.c.b16 %v1615, %v1611
        %v1648 = vpack.c.b16 %v1616, %v1612
        %v1649 = vpack.c.b16 %v1617, %v1613
        %v1650 = vpack.c.b16 %v1618, %v1614
        %1683 = vmatpush.bf16.msra.mxu0 %v1647
        %1684 = vmatpush.bf16.msra.mxu0 %v1643
        %1685 = vmatpush.bf16.msra.mxu0 %v1639
        %1686 = vmatpush.bf16.msra.mxu0 %v1635
        %1687 = vmatpush.bf16.msra.mxu0 %v1631
        %1688 = vmatpush.bf16.msra.mxu0 %v1627
        %1689 = vmatpush.bf16.msra.mxu0 %v1623
        %1690 = vmatpush.bf16.msra.mxu0 %v1619
        %1691 = vmatmul.bf16.gmra.mxu0 %v1514
        %v1692 = vpop.f32.mrf.mxu0
        %v1693 = vadd.f32 %v1519, %v1692
        %v1694 = vpop.f32.mrf.mxu0
        %1695 = vdwg.mxu0
        %1696 = vmatpush.bf16.msra.mxu0 %v1648
        %1697 = vmatpush.bf16.msra.mxu0 %v1644
        %1698 = vmatpush.bf16.msra.mxu0 %v1640
        %1699 = vmatpush.bf16.msra.mxu0 %v1636
        %1700 = vmatpush.bf16.msra.mxu0 %v1632
        %1701 = vmatpush.bf16.msra.mxu0 %v1628
        %1702 = vmatpush.bf16.msra.mxu0 %v1624
        %1703 = vmatpush.bf16.msra.mxu0 %v1620
        %1704 = vmatmul.bf16.gmra.mxu0 %v1514
        %v1705 = vpop.f32.mrf.mxu0
        %v1706 = vadd.f32 %v1520, %v1705
        %v1707 = vpop.f32.mrf.mxu0
        %1708 = vdwg.mxu0
        %1709 = vmatpush.bf16.msra.mxu0 %v1649
        %1710 = vmatpush.bf16.msra.mxu0 %v1645
        %1711 = vmatpush.bf16.msra.mxu0 %v1641
        %1712 = vmatpush.bf16.msra.mxu0 %v1637
        %1713 = vmatpush.bf16.msra.mxu0 %v1633
        %1714 = vmatpush.bf16.msra.mxu0 %v1629
        %1715 = vmatpush.bf16.msra.mxu0 %v1625
        %1716 = vmatpush.bf16.msra.mxu0 %v1621
        %1717 = vmatmul.bf16.gmra.mxu0 %v1514
        %v1718 = vpop.f32.mrf.mxu0
        %v1719 = vadd.f32 %v1521, %v1718
        %v1720 = vpop.f32.mrf.mxu0
        %1721 = vdwg.mxu0
        %1722 = vmatpush.bf16.msra.mxu0 %v1650
        %1723 = vmatpush.bf16.msra.mxu0 %v1646
        %1724 = vmatpush.bf16.msra.mxu0 %v1642
        %1725 = vmatpush.bf16.msra.mxu0 %v1638
        %1726 = vmatpush.bf16.msra.mxu0 %v1634
        %1727 = vmatpush.bf16.msra.mxu0 %v1630
        %1728 = vmatpush.bf16.msra.mxu0 %v1626
        %1729 = vmatpush.bf16.msra.mxu0 %v1622
        %1730 = vmatmul.bf16.gmra.mxu0 %v1514
        %v1731 = vpop.f32.mrf.mxu0
        %v1732 = vadd.f32 %v1522, %v1731
        %v1733 = vpop.f32.mrf.mxu0
        %1734 = vdwg.mxu0
        %v1735 = vmul.f32 %v1693, 1.702
        %v1736 = vmul.f32 %v1706, 1.702
        %v1737 = vmul.f32 %v1719, 1.702
        %v1738 = vmul.f32 %v1732, 1.702
        %v1739 = vxor.u32 %v1735, 2147483648
        %v1740 = vxor.u32 %v1736, 2147483648
        %v1741 = vxor.u32 %v1737, 2147483648
        %v1742 = vxor.u32 %v1738, 2147483648
        %v1743 = vmul.f32 %v1739, 1.442695
        %v1744 = vpow.pop %v1743
        %v1745 = vmul.f32 %v1740, 1.442695
        %v1746 = vpow.pop %v1745
        %v1747 = vmul.f32 %v1741, 1.442695
        %v1748 = vpow.pop %v1747
        %v1749 = vmul.f32 %v1742, 1.442695
        %v1750 = vpow.pop %v1749
        %v1751 = vadd.f32 %v1744, 1.0
        %v1752 = vadd.f32 %v1746, 1.0
        %v1753 = vadd.f32 %v1748, 1.0
        %v1754 = vadd.f32 %v1750, 1.0
        %v1755 = vrcp.pop %v1751
        %v1756 = vmul.f32 %v1751, %v1755
        %v1757 = vsub.f32 1.0, %v1756
        %v1758 = vmul.f32 %v1755, %v1757
        %v1759 = vadd.f32 %v1755, %v1758
        %vm1760 = vweird.f32 %v1751
        %vm1761 = vweird.f32 %v1755
        %vm1762 = vmor %vm1760, %vm1761
        %v1763 = vsel %vm1762, %v1755, %v1759
        %v1764 = vand.u32 2147483647, %v1751
        %vm1765 = vcmp.eq.f32.partialorder %v1764, 8.507059e+37
        %v1766 = vand.u32 %v1751, 2147483648
        %v1767 = vor.u32 1.1754944e-38, %v1766
        %v1768 = vsel %vm1765, %v1767, %v1763
        %v1769 = vmul.f32 1.0, %v1768
        %v1770 = vrcp.pop %v1752
        %v1771 = vmul.f32 %v1752, %v1770
        %v1772 = vsub.f32 1.0, %v1771
        %v1773 = vmul.f32 %v1770, %v1772
        %v1774 = vadd.f32 %v1770, %v1773
        %vm1775 = vweird.f32 %v1752
        %vm1776 = vweird.f32 %v1770
        %vm1777 = vmor %vm1775, %vm1776
        %v1778 = vsel %vm1777, %v1770, %v1774
        %v1779 = vand.u32 2147483647, %v1752
        %vm1780 = vcmp.eq.f32.partialorder %v1779, 8.507059e+37
        %v1781 = vand.u32 %v1752, 2147483648
        %v1782 = vor.u32 1.1754944e-38, %v1781
        %v1783 = vsel %vm1780, %v1782, %v1778
        %v1784 = vmul.f32 1.0, %v1783
        %v1785 = vrcp.pop %v1753
        %v1786 = vmul.f32 %v1753, %v1785
        %v1787 = vsub.f32 1.0, %v1786
        %v1788 = vmul.f32 %v1785, %v1787
        %v1789 = vadd.f32 %v1785, %v1788
        %vm1790 = vweird.f32 %v1753
        %vm1791 = vweird.f32 %v1785
        %vm1792 = vmor %vm1790, %vm1791
        %v1793 = vsel %vm1792, %v1785, %v1789
        %v1794 = vand.u32 2147483647, %v1753
        %vm1795 = vcmp.eq.f32.partialorder %v1794, 8.507059e+37
        %v1796 = vand.u32 %v1753, 2147483648
        %v1797 = vor.u32 1.1754944e-38, %v1796
        %v1798 = vsel %vm1795, %v1797, %v1793
        %v1799 = vmul.f32 1.0, %v1798
        %v1800 = vrcp.pop %v1754
        %v1801 = vmul.f32 %v1754, %v1800
        %v1802 = vsub.f32 1.0, %v1801
        %v1803 = vmul.f32 %v1800, %v1802
        %v1804 = vadd.f32 %v1800, %v1803
        %vm1805 = vweird.f32 %v1754
        %vm1806 = vweird.f32 %v1800
        %vm1807 = vmor %vm1805, %vm1806
        %v1808 = vsel %vm1807, %v1800, %v1804
        %v1809 = vand.u32 2147483647, %v1754
        %vm1810 = vcmp.eq.f32.partialorder %v1809, 8.507059e+37
        %v1811 = vand.u32 %v1754, 2147483648
        %v1812 = vor.u32 1.1754944e-38, %v1811
        %v1813 = vsel %vm1810, %v1812, %v1808
        %v1814 = vmul.f32 1.0, %v1813
        %v1815 = vmul.f32 %v1693, %v1769
        %v1816 = vmul.f32 %v1706, %v1784
        %v1817 = vmul.f32 %v1719, %v1799
        %v1818 = vmul.f32 %v1732, %v1814
        %v1819 = vld [vmem:[%s600] sm:$0xf]
        %v1820 = vld [vmem:[%s600 + $0x4] sm:$0xf]
        %v1821 = vld [vmem:[%s600 + $0x8] sm:$0xf]
        %v1822 = vld [vmem:[%s600 + $0xc] sm:$0xf]
        %v1823 = vld [vmem:[%s600 + $0x10] sm:$0xf]
        %v1824 = vld [vmem:[%s600 + $0x14] sm:$0xf]
        %v1825 = vld [vmem:[%s600 + $0x18] sm:$0xf]
        %v1826 = vld [vmem:[%s600 + $0x1c] sm:$0xf]
        %v1827 = vld [vmem:[%s600 + $0x20] sm:$0xf]
        %v1828 = vld [vmem:[%s600 + $0x24] sm:$0xf]
        %v1829 = vld [vmem:[%s600 + $0x28] sm:$0xf]
        %v1830 = vld [vmem:[%s600 + $0x2c] sm:$0xf]
        %v1831 = vld [vmem:[%s600 + $0x30] sm:$0xf]
        %v1832 = vld [vmem:[%s600 + $0x34] sm:$0xf]
        %v1833 = vld [vmem:[%s600 + $0x38] sm:$0xf]
        %v1834 = vld [vmem:[%s600 + $0x3c] sm:$0xf]
        %v1835 = vld [vmem:[%s600 + $0x40] sm:$0xf]
        %v1836 = vld [vmem:[%s600 + $0x44] sm:$0xf]
        %v1837 = vld [vmem:[%s600 + $0x48] sm:$0xf]
        %v1838 = vld [vmem:[%s600 + $0x4c] sm:$0xf]
        %v1839 = vld [vmem:[%s600 + $0x50] sm:$0xf]
        %v1840 = vld [vmem:[%s600 + $0x54] sm:$0xf]
        %v1841 = vld [vmem:[%s600 + $0x58] sm:$0xf]
        %v1842 = vld [vmem:[%s600 + $0x5c] sm:$0xf]
        %v1843 = vld [vmem:[%s600 + $0x60] sm:$0xf]
        %v1844 = vld [vmem:[%s600 + $0x64] sm:$0xf]
        %v1845 = vld [vmem:[%s600 + $0x68] sm:$0xf]
        %v1846 = vld [vmem:[%s600 + $0x6c] sm:$0xf]
        %v1847 = vld [vmem:[%s600 + $0x70] sm:$0xf]
        %v1848 = vld [vmem:[%s600 + $0x74] sm:$0xf]
        %v1849 = vld [vmem:[%s600 + $0x78] sm:$0xf]
        %v1850 = vld [vmem:[%s600 + $0x7c] sm:$0xf]
        %v1851 = vld [vmem:[%s600 + $0x80] sm:$0xf]
        %v1852 = vld [vmem:[%s600 + $0x84] sm:$0xf]
        %v1853 = vld [vmem:[%s600 + $0x88] sm:$0xf]
        %v1854 = vld [vmem:[%s600 + $0x8c] sm:$0xf]
        %v1855 = vld [vmem:[%s600 + $0x90] sm:$0xf]
        %v1856 = vld [vmem:[%s600 + $0x94] sm:$0xf]
        %v1857 = vld [vmem:[%s600 + $0x98] sm:$0xf]
        %v1858 = vld [vmem:[%s600 + $0x9c] sm:$0xf]
        %v1859 = vld [vmem:[%s600 + $0xa0] sm:$0xf]
        %v1860 = vld [vmem:[%s600 + $0xa4] sm:$0xf]
        %v1861 = vld [vmem:[%s600 + $0xa8] sm:$0xf]
        %v1862 = vld [vmem:[%s600 + $0xac] sm:$0xf]
        %v1863 = vld [vmem:[%s600 + $0xb0] sm:$0xf]
        %v1864 = vld [vmem:[%s600 + $0xb4] sm:$0xf]
        %v1865 = vld [vmem:[%s600 + $0xb8] sm:$0xf]
        %v1866 = vld [vmem:[%s600 + $0xbc] sm:$0xf]
        %v1867 = vld [vmem:[%s600 + $0xc0] sm:$0xf]
        %v1868 = vld [vmem:[%s600 + $0xc4] sm:$0xf]
        %v1869 = vld [vmem:[%s600 + $0xc8] sm:$0xf]
        %v1870 = vld [vmem:[%s600 + $0xcc] sm:$0xf]
        %v1871 = vld [vmem:[%s600 + $0xd0] sm:$0xf]
        %v1872 = vld [vmem:[%s600 + $0xd4] sm:$0xf]
        %v1873 = vld [vmem:[%s600 + $0xd8] sm:$0xf]
        %v1874 = vld [vmem:[%s600 + $0xdc] sm:$0xf]
        %v1875 = vld [vmem:[%s600 + $0xe0] sm:$0xf]
        %v1876 = vld [vmem:[%s600 + $0xe4] sm:$0xf]
        %v1877 = vld [vmem:[%s600 + $0xe8] sm:$0xf]
        %v1878 = vld [vmem:[%s600 + $0xec] sm:$0xf]
        %v1879 = vld [vmem:[%s600 + $0xf0] sm:$0xf]
        %v1880 = vld [vmem:[%s600 + $0xf4] sm:$0xf]
        %v1881 = vld [vmem:[%s600 + $0xf8] sm:$0xf]
        %v1882 = vld [vmem:[%s600 + $0xfc] sm:$0xf]
        %v1883 = vpack.c.bf16 %v1815, %v1815
        %v1884 = vpack.c.bf16 %v1816, %v1816
        %v1885 = vpack.c.bf16 %v1817, %v1817
        %v1886 = vpack.c.bf16 %v1818, %v1818
        %v1951 = vunpack.c.l.b16 %v1819
        %v1952 = vunpack.c.l.b16 %v1820
        %v1953 = vunpack.c.l.b16 %v1821
        %v1954 = vunpack.c.l.b16 %v1822
        %v1955 = vunpack.c.l.b16 %v1823
        %v1956 = vunpack.c.l.b16 %v1824
        %v1957 = vunpack.c.l.b16 %v1825
        %v1958 = vunpack.c.l.b16 %v1826
        %v1959 = vunpack.c.l.b16 %v1827
        %v1960 = vunpack.c.l.b16 %v1828
        %v1961 = vunpack.c.l.b16 %v1829
        %v1962 = vunpack.c.l.b16 %v1830
        %v1963 = vunpack.c.l.b16 %v1831
        %v1964 = vunpack.c.l.b16 %v1832
        %v1965 = vunpack.c.l.b16 %v1833
        %v1966 = vunpack.c.l.b16 %v1834
        %v1967 = vunpack.c.l.b16 %v1835
        %v1968 = vunpack.c.l.b16 %v1836
        %v1969 = vunpack.c.l.b16 %v1837
        %v1970 = vunpack.c.l.b16 %v1838
        %v1971 = vunpack.c.l.b16 %v1839
        %v1972 = vunpack.c.l.b16 %v1840
        %v1973 = vunpack.c.l.b16 %v1841
        %v1974 = vunpack.c.l.b16 %v1842
        %v1975 = vunpack.c.l.b16 %v1843
        %v1976 = vunpack.c.l.b16 %v1844
        %v1977 = vunpack.c.l.b16 %v1845
        %v1978 = vunpack.c.l.b16 %v1846
        %v1979 = vunpack.c.l.b16 %v1847
        %v1980 = vunpack.c.l.b16 %v1848
        %v1981 = vunpack.c.l.b16 %v1849
        %v1982 = vunpack.c.l.b16 %v1850
        %v1983 = vunpack.c.l.b16 %v1851
        %v1984 = vunpack.c.l.b16 %v1852
        %v1985 = vunpack.c.l.b16 %v1853
        %v1986 = vunpack.c.l.b16 %v1854
        %v1987 = vunpack.c.l.b16 %v1855
        %v1988 = vunpack.c.l.b16 %v1856
        %v1989 = vunpack.c.l.b16 %v1857
        %v1990 = vunpack.c.l.b16 %v1858
        %v1991 = vunpack.c.l.b16 %v1859
        %v1992 = vunpack.c.l.b16 %v1860
        %v1993 = vunpack.c.l.b16 %v1861
        %v1994 = vunpack.c.l.b16 %v1862
        %v1995 = vunpack.c.l.b16 %v1863
        %v1996 = vunpack.c.l.b16 %v1864
        %v1997 = vunpack.c.l.b16 %v1865
        %v1998 = vunpack.c.l.b16 %v1866
        %v1999 = vunpack.c.l.b16 %v1867
        %v2000 = vunpack.c.l.b16 %v1868
        %v2001 = vunpack.c.l.b16 %v1869
        %v2002 = vunpack.c.l.b16 %v1870
        %v2003 = vunpack.c.l.b16 %v1871
        %v2004 = vunpack.c.l.b16 %v1872
        %v2005 = vunpack.c.l.b16 %v1873
        %v2006 = vunpack.c.l.b16 %v1874
        %v2007 = vunpack.c.l.b16 %v1875
        %v2008 = vunpack.c.l.b16 %v1876
        %v2009 = vunpack.c.l.b16 %v1877
        %v2010 = vunpack.c.l.b16 %v1878
        %v2011 = vunpack.c.l.b16 %v1879
        %v2012 = vunpack.c.l.b16 %v1880
        %v2013 = vunpack.c.l.b16 %v1881
        %v2014 = vunpack.c.l.b16 %v1882
        %v2015 = vpack.c.b16 %v1952, %v1951
        %v2016 = vpack.c.b16 %v1954, %v1953
        %v2017 = vpack.c.b16 %v1956, %v1955
        %v2018 = vpack.c.b16 %v1958, %v1957
        %v2019 = vpack.c.b16 %v1960, %v1959
        %v2020 = vpack.c.b16 %v1962, %v1961
        %v2021 = vpack.c.b16 %v1964, %v1963
        %v2022 = vpack.c.b16 %v1966, %v1965
        %v2023 = vpack.c.b16 %v1968, %v1967
        %v2024 = vpack.c.b16 %v1970, %v1969
        %v2025 = vpack.c.b16 %v1972, %v1971
        %v2026 = vpack.c.b16 %v1974, %v1973
        %v2027 = vpack.c.b16 %v1976, %v1975
        %v2028 = vpack.c.b16 %v1978, %v1977
        %v2029 = vpack.c.b16 %v1980, %v1979
        %v2030 = vpack.c.b16 %v1982, %v1981
        %v2031 = vpack.c.b16 %v1984, %v1983
        %v2032 = vpack.c.b16 %v1986, %v1985
        %v2033 = vpack.c.b16 %v1988, %v1987
        %v2034 = vpack.c.b16 %v1990, %v1989
        %v2035 = vpack.c.b16 %v1992, %v1991
        %v2036 = vpack.c.b16 %v1994, %v1993
        %v2037 = vpack.c.b16 %v1996, %v1995
        %v2038 = vpack.c.b16 %v1998, %v1997
        %v2039 = vpack.c.b16 %v2000, %v1999
        %v2040 = vpack.c.b16 %v2002, %v2001
        %v2041 = vpack.c.b16 %v2004, %v2003
        %v2042 = vpack.c.b16 %v2006, %v2005
        %v2043 = vpack.c.b16 %v2008, %v2007
        %v2044 = vpack.c.b16 %v2010, %v2009
        %v2045 = vpack.c.b16 %v2012, %v2011
        %v2046 = vpack.c.b16 %v2014, %v2013
        %2079 = vmatpush.bf16.msra.mxu0 %v2022
        %2080 = vmatpush.bf16.msra.mxu0 %v2021
        %2081 = vmatpush.bf16.msra.mxu0 %v2020
        %2082 = vmatpush.bf16.msra.mxu0 %v2019
        %2083 = vmatpush.bf16.msra.mxu0 %v2018
        %2084 = vmatpush.bf16.msra.mxu0 %v2017
        %2085 = vmatpush.bf16.msra.mxu0 %v2016
        %2086 = vmatpush.bf16.msra.mxu0 %v2015
        %2087 = vmatmul.bf16.gmra.mxu0 %v1883
        %v2088 = vpop.f32.mrf.mxu0
        %v2089 = vadd.f32 0.0, %v2088
        %v2090 = vpop.f32.mrf.mxu0
        %2091 = vdwg.mxu0
        %2092 = vmatpush.bf16.msra.mxu0 %v2030
        %2093 = vmatpush.bf16.msra.mxu0 %v2029
        %2094 = vmatpush.bf16.msra.mxu0 %v2028
        %2095 = vmatpush.bf16.msra.mxu0 %v2027
        %2096 = vmatpush.bf16.msra.mxu0 %v2026
        %2097 = vmatpush.bf16.msra.mxu0 %v2025
        %2098 = vmatpush.bf16.msra.mxu0 %v2024
        %2099 = vmatpush.bf16.msra.mxu0 %v2023
        %2100 = vmatmul.bf16.gmra.mxu0 %v1884
        %v2101 = vpop.f32.mrf.mxu0
        %v2102 = vadd.f32 %v2089, %v2101
        %v2103 = vpop.f32.mrf.mxu0
        %2104 = vdwg.mxu0
        %2105 = vmatpush.bf16.msra.mxu0 %v2038
        %2106 = vmatpush.bf16.msra.mxu0 %v2037
        %2107 = vmatpush.bf16.msra.mxu0 %v2036
        %2108 = vmatpush.bf16.msra.mxu0 %v2035
        %2109 = vmatpush.bf16.msra.mxu0 %v2034
        %2110 = vmatpush.bf16.msra.mxu0 %v2033
        %2111 = vmatpush.bf16.msra.mxu0 %v2032
        %2112 = vmatpush.bf16.msra.mxu0 %v2031
        %2113 = vmatmul.bf16.gmra.mxu0 %v1885
        %v2114 = vpop.f32.mrf.mxu0
        %v2115 = vadd.f32 %v2102, %v2114
        %v2116 = vpop.f32.mrf.mxu0
        %2117 = vdwg.mxu0
        %2118 = vmatpush.bf16.msra.mxu0 %v2046
        %2119 = vmatpush.bf16.msra.mxu0 %v2045
        %2120 = vmatpush.bf16.msra.mxu0 %v2044
        %2121 = vmatpush.bf16.msra.mxu0 %v2043
        %2122 = vmatpush.bf16.msra.mxu0 %v2042
        %2123 = vmatpush.bf16.msra.mxu0 %v2041
        %2124 = vmatpush.bf16.msra.mxu0 %v2040
        %2125 = vmatpush.bf16.msra.mxu0 %v2039
        %2126 = vmatmul.bf16.gmra.mxu0 %v1886
        %v2127 = vpop.f32.mrf.mxu0
        %v2128 = vadd.f32 %v2115, %v2127
        %v2129 = vpop.f32.mrf.mxu0
        %2130 = vdwg.mxu0
        %v2131 = vadd.f32 %v1453, %v2128
        %v2132 = vperm.slane %v875, 0
        %v2133 = vadd.f32 %v2131, %v2132
        %2134 = vst [vmem:[%s667] sm:$0xff] %v2133
        %s2135 = sand.u32 %s294, 1
        %s2136 = scalar_lea.sflag [#allocation4], %s2135
        %s2137 = sand.u32 %s294, 1
        %s2138 = smul.addr %s2137, 8
        %s2139 = scalar_lea.vmem [#allocation16], %s2138
        // Predicated region
        $region105: #{tpu_custom_call.1} parent=59 // pred_check
          %p2140 = pneg %p304
        $region106: #{tpu_custom_call.1} parent=59 // pred_check_branch
          %2142 = sbr.rel (%p2140) target = $region108
        $region107: #{tpu_custom_call.1} parent=59 // pred_region
          %2144 = vsyncadd %s2136, 0
          %s2145 = smul.addr %s33, 8
          %s2146 = scalar_lea.hbm %s10, %s2145
          %s2148 = sshll.u32 %s2139, 4
          %s2149 = int_to_ptr.vmem [resolvable:$true] %s2148
          %s2150 = sshll.u32 %s2146, 4
          %s2151 = int_to_ptr.hbm [resolvable:$true] %s2150
          %2153 = dma.vmem_to_hbm [thread:$0]  %s2149, 128, %s2151, %s2136
        $region108: #{tpu_custom_call.1} parent=59 // pred_fallthru
          _
      $region60: #{tpu_custom_call.1} parent=5 // pred_fallthru
        _
      %p2154 = scmp.le.s32.totalorder 2, %s24
      // Predicated region
      $region109: #{tpu_custom_call.1} parent=5 // pred_check
        %p2155 = pneg %p2154
      $region110: #{tpu_custom_call.1} parent=5 // pred_check_branch
        %2157 = sbr.rel (%p2155) target = $region112
      $region111: #{tpu_custom_call.1} parent=5 // pred_region
        %s2158 = ssub.s32 %s24, 2
        // Predicated region
        $region113: #{tpu_custom_call.1} parent=111 // pred_check
          %p2159 = pneg %p310
        $region114: #{tpu_custom_call.1} parent=111 // pred_check_branch
          %2161 = sbr.rel (%p2159) target = $region116
        $region115: #{tpu_custom_call.1} parent=111 // pred_region
          %s2162 = sand.u32 %s295, 1
          %s2163 = scalar_lea.sflag [#allocation4], %s2162
          %s2164 = sand.u32 %s295, 1
          %s2165 = smul.addr %s2164, 8
          %s2166 = scalar_lea.vmem [#allocation16], %s2165
          %2168 = dma.done %s2163, 128
        $region116: #{tpu_custom_call.1} parent=111 // pred_fallthru
          _
      $region112: #{tpu_custom_call.1} parent=5 // pred_fallthru
        _
    $region6: #{tpu_custom_call.1} parent=1 // loop_footer
      %s28 = sadd.s32 1, %s24
    $region7: #{tpu_custom_call.1} parent=1 // loop_footer_branch
      %23 = sbr.rel target = $region3
    $region8: #{tpu_custom_call.1} parent=1 // loop_exit
      _
    %2169 = vsyncpa [#allocation3], 1
    %s2170 = scalar_lea.sflag [#allocation3], 1
    %2171 = vsyncpa %s2170, 1
    %2172 = vsyncpa [#allocation6], 1
    %2173 = vsyncpa [#allocation9], 1
    %2174 = vsyncpa [#allocation4], 1
    %s2175 = scalar_lea.sflag [#allocation4], 1
    %2176 = vsyncpa %s2175, 1

</llo_original>
